<compile_context>
chip_gen: v7x
topology: tpu7x:2x2x1
jax: 0.10.0
libtpu: 0.0.40
codegen_flags: <defaults>
</compile_context>

<pallas_src>
import jax
import jax.numpy as jnp
from jax.experimental import pallas as pl
from jax.experimental.pallas import tpu as pltpu


def point_encoder_kernel(x_ref, w_in_ref, b_in_ref,
                         w_lyr_ref, b_lyr_ref,
                         w_ga_ref, w_gb_ref, b_g_ref,
                         w_out_ref, b_out_ref,
                         o_ref):
    tb, L, d_in = x_ref.shape
    Hp = w_in_ref.shape[1]
    Dp = o_ref.shape[1]
    num_lyr = w_lyr_ref.shape[0]
    M = tb * L
    cdt = w_lyr_ref.dtype            # matmul operand dtype (bf16 or f32)

    # x = relu(proj_in(x)); all TB*L points in one matmul (proj_in kept f32).
    x = x_ref[...].reshape(M, d_in).astype(w_in_ref.dtype)
    h = jnp.dot(x, w_in_ref[...], preferred_element_type=jnp.float32) + b_in_ref[...]
    h = jnp.maximum(h, 0.0)                                            # [M, Hp]

    # proj_out(cat(xs, dim=2)) == sum_i xs[i] @ W_out_chunk[i]  (+ bias once)
    y = jnp.zeros((M, Dp), jnp.float32)

    for i in range(num_lyr):
        # x = relu(lyr(x))
        h = jnp.dot(h.astype(cdt), w_lyr_ref[i],
                    preferred_element_type=jnp.float32) + b_lyr_ref[i]
        h = jnp.maximum(h, 0.0)                                        # [M, Hp]

        # gx = max over points per batch element; glyr([x, gx]) == x@Wa + gx@Wb + b
        g = jnp.max(h.reshape(tb, L, Hp), axis=1)                      # [tb, Hp]
        gb = jnp.dot(g.astype(cdt), w_gb_ref[i],
                     preferred_element_type=jnp.float32) + b_g_ref[i]  # [tb, Hp]
        ha = jnp.dot(h.astype(cdt), w_ga_ref[i],
                     preferred_element_type=jnp.float32)               # [M, Hp]
        h = jnp.maximum(ha.reshape(tb, L, Hp) + gb[:, None, :], 0.0)
        h = h.reshape(M, Hp)

        y = y + jnp.dot(h.astype(cdt), w_out_ref[i],
                        preferred_element_type=jnp.float32)            # [M, Dp]

    # x.max(dim=1).values ; bias is per-point constant, so add after the max.
    o_ref[...] = jnp.max(y.reshape(tb, L, Dp), axis=1) + b_out_ref[...]


def _full_spec(a):
    nd = a.ndim
    return pl.BlockSpec(a.shape, lambda i, _nd=nd: (0,) * _nd)


def point_encoder_forward(x, p, *, tb=None):
    """x: [b, t, L, d_in]  ->  [b, d_out * t]  (matches the PyTorch forward)."""
    b, t, L, d_in = x.shape
    B = b * t
    d_out = p["d_out"]
    Dp = p["w_out"].shape[2]

    if tb is None:
        # Aim for ~256 matmul rows per grid step (review: TB*L in 128..512).
        tb = max(1, min(B, 256 // max(L, 1)))
    B_pad = -(-B // tb) * tb

    xf = x.reshape(B, L, d_in)
    if B_pad != B:
        xf = jnp.pad(xf, ((0, B_pad - B), (0, 0), (0, 0)))

    weight_names = ("w_in", "b_in", "w_lyr", "b_lyr",
                    "w_ga", "w_gb", "b_g", "w_out", "b_out")
    weights = [p[k] for k in weight_names]

    out = pl.pallas_call(
        point_encoder_kernel,
        out_shape=jax.ShapeDtypeStruct((B_pad, Dp), jnp.float32),
        grid=(B_pad // tb,),
        in_specs=[pl.BlockSpec((tb, L, d_in), lambda i: (i, 0, 0))]
                 + [_full_spec(w) for w in weights],
        out_specs=pl.BlockSpec((tb, Dp), lambda i: (i, 0)),
        compiler_params=pltpu.CompilerParams(
            dimension_semantics=("parallel",),           # independent batch tiles
            vmem_limit_bytes=48 * 1024 * 1024,           # headroom for large hidden dims (< v7x 64 MiB)
        ),
    )(xf, *weights)

    y = out[:B, :d_out]                                   # drop batch / lane padding
    # einops.rearrange '(b t) d -> b (d t)'
    return y.reshape(b, t, d_out).transpose(0, 2, 1).reshape(b, d_out * t)


def init_params(key, in_dim, hidden_dim, embed_dim, num_lyr, pnt_cond_steps):
    """Logical (unpadded, f32) parameters, weights stored [in, out]."""
    d_out = embed_dim // pnt_cond_steps
    ks = jax.random.split(key, 8)
    s = 0.1
    return dict(
        w_in=jax.random.normal(ks[0], (in_dim, hidden_dim), jnp.float32) * s,
        b_in=jax.random.normal(ks[1], (hidden_dim,), jnp.float32) * s,
        w_lyr=jax.random.normal(ks[2], (num_lyr, hidden_dim, hidden_dim), jnp.float32) * s,
        b_lyr=jax.random.normal(ks[3], (num_lyr, hidden_dim), jnp.float32) * s,
        w_g=jax.random.normal(ks[4], (num_lyr, 2 * hidden_dim, hidden_dim), jnp.float32) * s,
        b_g=jax.random.normal(ks[5], (num_lyr, hidden_dim), jnp.float32) * s,
        w_out=jax.random.normal(ks[6], (num_lyr * hidden_dim, d_out), jnp.float32) * s,
        b_out=jax.random.normal(ks[7], (d_out,), jnp.float32) * s,
    )


def _round_up(n, m):
    return -(-n // m) * m


def prepare_params(lp, compute_dtype=jnp.bfloat16):
    """Pad hidden/out feature dims to lane multiples of 128, split the glyr and
    proj_out weights per the concat rewrite, and cast the big matmul operands
    to `compute_dtype` (bf16 by default). Padded bias entries are zero, so ReLU
    keeps padded columns exactly 0 -> results are unchanged."""
    num_lyr, H, _ = lp["w_lyr"].shape
    d_out = lp["w_out"].shape[1]
    Hp = _round_up(H, 128)
    Dp = _round_up(d_out, 128)

    def pad_last2(a, r, c):
        pads = [(0, 0)] * (a.ndim - 2) + [(0, r - a.shape[-2]), (0, c - a.shape[-1])]
        return jnp.pad(a, pads)

    return dict(
        # proj_in stays f32 (K = d_in is tiny; avoids nothing to cast).
        w_in=pad_last2(lp["w_in"], lp["w_in"].shape[0], Hp),
        w_lyr=pad_last2(lp["w_lyr"], Hp, Hp).astype(compute_dtype),
        w_ga=pad_last2(lp["w_g"][:, :H, :], Hp, Hp).astype(compute_dtype),   # rows acting on x
        w_gb=pad_last2(lp["w_g"][:, H:, :], Hp, Hp).astype(compute_dtype),   # rows acting on gx
        w_out=pad_last2(lp["w_out"].reshape(num_lyr, H, d_out), Hp, Dp).astype(compute_dtype),
        # Biases stay f32 (added to f32 accumulators); padded entries are 0.
        b_in=pad_last2(lp["b_in"][None, :], 1, Hp),
        b_lyr=pad_last2(lp["b_lyr"][:, None, :], 1, Hp),
        b_g=pad_last2(lp["b_g"][:, None, :], 1, Hp),
        b_out=pad_last2(lp["b_out"][None, :], 1, Dp),
        d_out=d_out,
    )


def reference_forward(x, lp):
    """Pure-JAX (f32) re-implementation of the PyTorch forward for verification."""
    b, t, L, d_in = x.shape
    num_lyr = lp["w_lyr"].shape[0]
    h = jax.nn.relu(x.reshape(b * t, L, d_in) @ lp["w_in"] + lp["b_in"])
    feats = []
    for i in range(num_lyr):
        h = jax.nn.relu(h @ lp["w_lyr"][i] + lp["b_lyr"][i])
        g = h.max(axis=1, keepdims=True)
        cat = jnp.concatenate([h, jnp.broadcast_to(g, h.shape)], axis=-1)
        h = jax.nn.relu(cat @ lp["w_g"][i] + lp["b_g"][i])
        feats.append(h)
    y = jnp.concatenate(feats, axis=-1) @ lp["w_out"] + lp["b_out"]
    y = y.max(axis=1)
    d = y.shape[-1]
    return y.reshape(b, t, d).transpose(0, 2, 1).reshape(b, d * t)


if __name__ == "__main__":
    # in_shape = (num_point=8, in_dim=4), pnt_cond_steps=1, hidden_dim=32,
    # embed_dim=32, num_lyr=4  ->  x: [b=2, t=1, l=8, d=4]
    b, t, L, d_in = 2, 1, 8, 4
    hidden_dim, embed_dim, pnt_cond_steps, num_lyr = 32, 32, 1, 4

    key = jax.random.PRNGKey(0)
    kx, kp = jax.random.split(key)
    x = jax.random.normal(kx, (b, t, L, d_in), jnp.float32)
    lp = init_params(kp, d_in, hidden_dim, embed_dim, num_lyr, pnt_cond_steps)
    ref = reference_forward(x, lp)

    # f32 matmul operands: same math as the PyTorch module (tight tolerance).
    p_f32 = prepare_params(lp, compute_dtype=jnp.float32)
    out_f32 = jax.block_until_ready(point_encoder_forward(x, p_f32))
    assert out_f32.shape == (b, (embed_dim // pnt_cond_steps) * t), out_f32.shape
    assert jnp.allclose(out_f32, ref, atol=1e-5, rtol=1e-5), "f32 mismatch vs reference"

    # Default bf16 matmul operands + f32 accumulation (v6e/v7x MXU-native path).
    p_bf16 = prepare_params(lp)  # compute_dtype=jnp.bfloat16
    out_bf16 = jax.block_until_ready(point_encoder_forward(x, p_bf16))
    assert out_bf16.shape == out_f32.shape
    assert jnp.allclose(out_bf16, ref, atol=3e-2, rtol=5e-2), "bf16 mismatch vs reference"

    print("KERNEL_OK")
</pallas_src>

<mosaic_0001>
module attributes {stable_mosaic.version = 11 : i64} {
  func.func @point_encoder_kernel(%arg0: i32, %arg1: memref<2x8x4xf32, #tpu.memory_space<vmem>>, %arg2: memref<4x128xf32, #tpu.memory_space<vmem>>, %arg3: memref<1x128xf32, #tpu.memory_space<vmem>>, %arg4: memref<4x128x128xf32, #tpu.memory_space<vmem>>, %arg5: memref<4x1x128xf32, #tpu.memory_space<vmem>>, %arg6: memref<4x128x128xf32, #tpu.memory_space<vmem>>, %arg7: memref<4x128x128xf32, #tpu.memory_space<vmem>>, %arg8: memref<4x1x128xf32, #tpu.memory_space<vmem>>, %arg9: memref<4x128x128xf32, #tpu.memory_space<vmem>>, %arg10: memref<1x128xf32, #tpu.memory_space<vmem>>, %arg11: memref<2x128xf32, #tpu.memory_space<vmem>>) attributes {dimension_semantics = [#tpu.dimension_semantics<parallel>], iteration_bounds = array<i64: 1>, scalar_prefetch = 0 : i64, scratch_operands = 0 : i64, tpu.core_type = #tpu.core_type<tc>, window_params = [{transform_indices = @transform_0, window_bounds = array<i64: 2, 8, 4>}, {pipeline_mode = #tpu.pipeline_mode<synchronous>, transform_indices = @transform_1, window_bounds = array<i64: 4, 128>}, {pipeline_mode = #tpu.pipeline_mode<synchronous>, transform_indices = @transform_2, window_bounds = array<i64: 1, 128>}, {pipeline_mode = #tpu.pipeline_mode<synchronous>, transform_indices = @transform_3, window_bounds = array<i64: 4, 128, 128>}, {pipeline_mode = #tpu.pipeline_mode<synchronous>, transform_indices = @transform_4, window_bounds = array<i64: 4, 1, 128>}, {pipeline_mode = #tpu.pipeline_mode<synchronous>, transform_indices = @transform_5, window_bounds = array<i64: 4, 128, 128>}, {pipeline_mode = #tpu.pipeline_mode<synchronous>, transform_indices = @transform_6, window_bounds = array<i64: 4, 128, 128>}, {pipeline_mode = #tpu.pipeline_mode<synchronous>, transform_indices = @transform_7, window_bounds = array<i64: 4, 1, 128>}, {pipeline_mode = #tpu.pipeline_mode<synchronous>, transform_indices = @transform_8, window_bounds = array<i64: 4, 128, 128>}, {pipeline_mode = #tpu.pipeline_mode<synchronous>, transform_indices = @transform_9, window_bounds = array<i64: 1, 128>}, {transform_indices = @transform_10, window_bounds = array<i64: 2, 128>}]} {
    %c0 = arith.constant 0 : index
    %c0_0 = arith.constant 0 : index
    %c0_1 = arith.constant 0 : index
    %0 = vector.load %arg1[%c0, %c0_0, %c0_1] : memref<2x8x4xf32, #tpu.memory_space<vmem>>, vector<2x8x4xf32>
    %1 = vector.shape_cast %0 : vector<2x8x4xf32> to vector<16x4xf32>
    %c0_2 = arith.constant 0 : index
    %c0_3 = arith.constant 0 : index
    %2 = vector.load %arg2[%c0_2, %c0_3] : memref<4x128xf32, #tpu.memory_space<vmem>>, vector<4x128xf32>
    %cst = arith.constant dense<0.000000e+00> : vector<16x128xf32>
    %3 = tpu.matmul %1, %2, %cst {dimension_numbers = #tpu.dot_dimension_numbers<[1], [0], [0], [1], [0, 0, 1, 1], [], []>} : vector<16x4xf32>, vector<4x128xf32>, vector<16x128xf32> -> vector<16x128xf32>
    %c0_4 = arith.constant 0 : index
    %c0_5 = arith.constant 0 : index
    %4 = vector.load %arg3[%c0_4, %c0_5] : memref<1x128xf32, #tpu.memory_space<vmem>>, vector<1x128xf32>
    %5 = vector.broadcast %4 : vector<1x128xf32> to vector<16x128xf32>
    %6 = arith.addf %3, %5 : vector<16x128xf32>
    %cst_6 = arith.constant 0.000000e+00 : f32
    %7 = vector.broadcast %cst_6 : f32 to vector<16x128xf32>
    %8 = arith.maximumf %6, %7 : vector<16x128xf32>
    %cst_7 = arith.constant 0.000000e+00 : f32
    %9 = vector.broadcast %cst_7 : f32 to vector<16x128xf32>
    %c0_8 = arith.constant 0 : index
    %c0_9 = arith.constant 0 : index
    %c0_10 = arith.constant 0 : index
    %10 = vector.load %arg4[%c0_8, %c0_9, %c0_10] : memref<4x128x128xf32, #tpu.memory_space<vmem>>, vector<1x128x128xf32>
    %11 = vector.shape_cast %10 : vector<1x128x128xf32> to vector<128x128xf32>
    %cst_11 = arith.constant dense<0.000000e+00> : vector<16x128xf32>
    %12 = tpu.matmul %8, %11, %cst_11 {dimension_numbers = #tpu.dot_dimension_numbers<[1], [0], [0], [1], [0, 0, 1, 1], [], []>} : vector<16x128xf32>, vector<128x128xf32>, vector<16x128xf32> -> vector<16x128xf32>
    %c0_12 = arith.constant 0 : index
    %c0_13 = arith.constant 0 : index
    %c0_14 = arith.constant 0 : index
    %13 = vector.load %arg5[%c0_12, %c0_13, %c0_14] : memref<4x1x128xf32, #tpu.memory_space<vmem>>, vector<1x1x128xf32>
    %14 = vector.shape_cast %13 : vector<1x1x128xf32> to vector<1x128xf32>
    %15 = vector.broadcast %14 : vector<1x128xf32> to vector<16x128xf32>
    %16 = arith.addf %12, %15 : vector<16x128xf32>
    %cst_15 = arith.constant 0.000000e+00 : f32
    %17 = vector.broadcast %cst_15 : f32 to vector<16x128xf32>
    %18 = arith.maximumf %16, %17 : vector<16x128xf32>
    %19 = vector.shape_cast %18 : vector<16x128xf32> to vector<2x8x128xf32>
    %cst_16 = arith.constant dense<0xFF800000> : vector<2x128xf32>
    %20 = vector.multi_reduction <maximumf>, %19, %cst_16 [1] : vector<2x8x128xf32> to vector<2x128xf32>
    %c0_17 = arith.constant 0 : index
    %c0_18 = arith.constant 0 : index
    %c0_19 = arith.constant 0 : index
    %21 = vector.load %arg7[%c0_17, %c0_18, %c0_19] : memref<4x128x128xf32, #tpu.memory_space<vmem>>, vector<1x128x128xf32>
    %22 = vector.shape_cast %21 : vector<1x128x128xf32> to vector<128x128xf32>
    %cst_20 = arith.constant dense<0.000000e+00> : vector<2x128xf32>
    %23 = tpu.matmul %20, %22, %cst_20 {dimension_numbers = #tpu.dot_dimension_numbers<[1], [0], [0], [1], [0, 0, 1, 1], [], []>} : vector<2x128xf32>, vector<128x128xf32>, vector<2x128xf32> -> vector<2x128xf32>
    %c0_21 = arith.constant 0 : index
    %c0_22 = arith.constant 0 : index
    %c0_23 = arith.constant 0 : index
    %24 = vector.load %arg8[%c0_21, %c0_22, %c0_23] : memref<4x1x128xf32, #tpu.memory_space<vmem>>, vector<1x1x128xf32>
    %25 = vector.shape_cast %24 : vector<1x1x128xf32> to vector<1x128xf32>
    %26 = vector.broadcast %25 : vector<1x128xf32> to vector<2x128xf32>
    %27 = arith.addf %23, %26 : vector<2x128xf32>
    %c0_24 = arith.constant 0 : index
    %c0_25 = arith.constant 0 : index
    %c0_26 = arith.constant 0 : index
    %28 = vector.load %arg6[%c0_24, %c0_25, %c0_26] : memref<4x128x128xf32, #tpu.memory_space<vmem>>, vector<1x128x128xf32>
    %29 = vector.shape_cast %28 : vector<1x128x128xf32> to vector<128x128xf32>
    %cst_27 = arith.constant dense<0.000000e+00> : vector<16x128xf32>
    %30 = tpu.matmul %18, %29, %cst_27 {dimension_numbers = #tpu.dot_dimension_numbers<[1], [0], [0], [1], [0, 0, 1, 1], [], []>} : vector<16x128xf32>, vector<128x128xf32>, vector<16x128xf32> -> vector<16x128xf32>
    %31 = vector.shape_cast %30 : vector<16x128xf32> to vector<2x8x128xf32>
    %32 = vector.shape_cast %27 : vector<2x128xf32> to vector<2x1x128xf32>
    %33 = vector.broadcast %32 : vector<2x1x128xf32> to vector<2x8x128xf32>
    %34 = arith.addf %31, %33 : vector<2x8x128xf32>
    %cst_28 = arith.constant 0.000000e+00 : f32
    %35 = vector.broadcast %cst_28 : f32 to vector<2x8x128xf32>
    %36 = arith.maximumf %34, %35 : vector<2x8x128xf32>
    %37 = vector.shape_cast %36 : vector<2x8x128xf32> to vector<16x128xf32>
    %c0_29 = arith.constant 0 : index
    %c0_30 = arith.constant 0 : index
    %c0_31 = arith.constant 0 : index
    %38 = vector.load %arg9[%c0_29, %c0_30, %c0_31] : memref<4x128x128xf32, #tpu.memory_space<vmem>>, vector<1x128x128xf32>
    %39 = vector.shape_cast %38 : vector<1x128x128xf32> to vector<128x128xf32>
    %cst_32 = arith.constant dense<0.000000e+00> : vector<16x128xf32>
    %40 = tpu.matmul %37, %39, %cst_32 {dimension_numbers = #tpu.dot_dimension_numbers<[1], [0], [0], [1], [0, 0, 1, 1], [], []>} : vector<16x128xf32>, vector<128x128xf32>, vector<16x128xf32> -> vector<16x128xf32>
    %41 = arith.addf %9, %40 : vector<16x128xf32>
    %c1 = arith.constant 1 : index
    %c0_33 = arith.constant 0 : index
    %c0_34 = arith.constant 0 : index
    %42 = vector.load %arg4[%c1, %c0_33, %c0_34] : memref<4x128x128xf32, #tpu.memory_space<vmem>>, vector<1x128x128xf32>
    %43 = vector.shape_cast %42 : vector<1x128x128xf32> to vector<128x128xf32>
    %cst_35 = arith.constant dense<0.000000e+00> : vector<16x128xf32>
    %44 = tpu.matmul %37, %43, %cst_35 {dimension_numbers = #tpu.dot_dimension_numbers<[1], [0], [0], [1], [0, 0, 1, 1], [], []>} : vector<16x128xf32>, vector<128x128xf32>, vector<16x128xf32> -> vector<16x128xf32>
    %c1_36 = arith.constant 1 : index
    %c0_37 = arith.constant 0 : index
    %c0_38 = arith.constant 0 : index
    %45 = vector.load %arg5[%c1_36, %c0_37, %c0_38] : memref<4x1x128xf32, #tpu.memory_space<vmem>>, vector<1x1x128xf32>
    %46 = vector.shape_cast %45 : vector<1x1x128xf32> to vector<1x128xf32>
    %47 = vector.broadcast %46 : vector<1x128xf32> to vector<16x128xf32>
    %48 = arith.addf %44, %47 : vector<16x128xf32>
    %cst_39 = arith.constant 0.000000e+00 : f32
    %49 = vector.broadcast %cst_39 : f32 to vector<16x128xf32>
    %50 = arith.maximumf %48, %49 : vector<16x128xf32>
    %51 = vector.shape_cast %50 : vector<16x128xf32> to vector<2x8x128xf32>
    %cst_40 = arith.constant dense<0xFF800000> : vector<2x128xf32>
    %52 = vector.multi_reduction <maximumf>, %51, %cst_40 [1] : vector<2x8x128xf32> to vector<2x128xf32>
    %c1_41 = arith.constant 1 : index
    %c0_42 = arith.constant 0 : index
    %c0_43 = arith.constant 0 : index
    %53 = vector.load %arg7[%c1_41, %c0_42, %c0_43] : memref<4x128x128xf32, #tpu.memory_space<vmem>>, vector<1x128x128xf32>
    %54 = vector.shape_cast %53 : vector<1x128x128xf32> to vector<128x128xf32>
    %cst_44 = arith.constant dense<0.000000e+00> : vector<2x128xf32>
    %55 = tpu.matmul %52, %54, %cst_44 {dimension_numbers = #tpu.dot_dimension_numbers<[1], [0], [0], [1], [0, 0, 1, 1], [], []>} : vector<2x128xf32>, vector<128x128xf32>, vector<2x128xf32> -> vector<2x128xf32>
    %c1_45 = arith.constant 1 : index
    %c0_46 = arith.constant 0 : index
    %c0_47 = arith.constant 0 : index
    %56 = vector.load %arg8[%c1_45, %c0_46, %c0_47] : memref<4x1x128xf32, #tpu.memory_space<vmem>>, vector<1x1x128xf32>
    %57 = vector.shape_cast %56 : vector<1x1x128xf32> to vector<1x128xf32>
    %58 = vector.broadcast %57 : vector<1x128xf32> to vector<2x128xf32>
    %59 = arith.addf %55, %58 : vector<2x128xf32>
    %c1_48 = arith.constant 1 : index
    %c0_49 = arith.constant 0 : index
    %c0_50 = arith.constant 0 : index
    %60 = vector.load %arg6[%c1_48, %c0_49, %c0_50] : memref<4x128x128xf32, #tpu.memory_space<vmem>>, vector<1x128x128xf32>
    %61 = vector.shape_cast %60 : vector<1x128x128xf32> to vector<128x128xf32>
    %cst_51 = arith.constant dense<0.000000e+00> : vector<16x128xf32>
    %62 = tpu.matmul %50, %61, %cst_51 {dimension_numbers = #tpu.dot_dimension_numbers<[1], [0], [0], [1], [0, 0, 1, 1], [], []>} : vector<16x128xf32>, vector<128x128xf32>, vector<16x128xf32> -> vector<16x128xf32>
    %63 = vector.shape_cast %62 : vector<16x128xf32> to vector<2x8x128xf32>
    %64 = vector.shape_cast %59 : vector<2x128xf32> to vector<2x1x128xf32>
    %65 = vector.broadcast %64 : vector<2x1x128xf32> to vector<2x8x128xf32>
    %66 = arith.addf %63, %65 : vector<2x8x128xf32>
    %cst_52 = arith.constant 0.000000e+00 : f32
    %67 = vector.broadcast %cst_52 : f32 to vector<2x8x128xf32>
    %68 = arith.maximumf %66, %67 : vector<2x8x128xf32>
    %69 = vector.shape_cast %68 : vector<2x8x128xf32> to vector<16x128xf32>
    %c1_53 = arith.constant 1 : index
    %c0_54 = arith.constant 0 : index
    %c0_55 = arith.constant 0 : index
    %70 = vector.load %arg9[%c1_53, %c0_54, %c0_55] : memref<4x128x128xf32, #tpu.memory_space<vmem>>, vector<1x128x128xf32>
    %71 = vector.shape_cast %70 : vector<1x128x128xf32> to vector<128x128xf32>
    %cst_56 = arith.constant dense<0.000000e+00> : vector<16x128xf32>
    %72 = tpu.matmul %69, %71, %cst_56 {dimension_numbers = #tpu.dot_dimension_numbers<[1], [0], [0], [1], [0, 0, 1, 1], [], []>} : vector<16x128xf32>, vector<128x128xf32>, vector<16x128xf32> -> vector<16x128xf32>
    %73 = arith.addf %41, %72 : vector<16x128xf32>
    %c2 = arith.constant 2 : index
    %c0_57 = arith.constant 0 : index
    %c0_58 = arith.constant 0 : index
    %74 = vector.load %arg4[%c2, %c0_57, %c0_58] : memref<4x128x128xf32, #tpu.memory_space<vmem>>, vector<1x128x128xf32>
    %75 = vector.shape_cast %74 : vector<1x128x128xf32> to vector<128x128xf32>
    %cst_59 = arith.constant dense<0.000000e+00> : vector<16x128xf32>
    %76 = tpu.matmul %69, %75, %cst_59 {dimension_numbers = #tpu.dot_dimension_numbers<[1], [0], [0], [1], [0, 0, 1, 1], [], []>} : vector<16x128xf32>, vector<128x128xf32>, vector<16x128xf32> -> vector<16x128xf32>
    %c2_60 = arith.constant 2 : index
    %c0_61 = arith.constant 0 : index
    %c0_62 = arith.constant 0 : index
    %77 = vector.load %arg5[%c2_60, %c0_61, %c0_62] : memref<4x1x128xf32, #tpu.memory_space<vmem>>, vector<1x1x128xf32>
    %78 = vector.shape_cast %77 : vector<1x1x128xf32> to vector<1x128xf32>
    %79 = vector.broadcast %78 : vector<1x128xf32> to vector<16x128xf32>
    %80 = arith.addf %76, %79 : vector<16x128xf32>
    %cst_63 = arith.constant 0.000000e+00 : f32
    %81 = vector.broadcast %cst_63 : f32 to vector<16x128xf32>
    %82 = arith.maximumf %80, %81 : vector<16x128xf32>
    %83 = vector.shape_cast %82 : vector<16x128xf32> to vector<2x8x128xf32>
    %cst_64 = arith.constant dense<0xFF800000> : vector<2x128xf32>
    %84 = vector.multi_reduction <maximumf>, %83, %cst_64 [1] : vector<2x8x128xf32> to vector<2x128xf32>
    %c2_65 = arith.constant 2 : index
    %c0_66 = arith.constant 0 : index
    %c0_67 = arith.constant 0 : index
    %85 = vector.load %arg7[%c2_65, %c0_66, %c0_67] : memref<4x128x128xf32, #tpu.memory_space<vmem>>, vector<1x128x128xf32>
    %86 = vector.shape_cast %85 : vector<1x128x128xf32> to vector<128x128xf32>
    %cst_68 = arith.constant dense<0.000000e+00> : vector<2x128xf32>
    %87 = tpu.matmul %84, %86, %cst_68 {dimension_numbers = #tpu.dot_dimension_numbers<[1], [0], [0], [1], [0, 0, 1, 1], [], []>} : vector<2x128xf32>, vector<128x128xf32>, vector<2x128xf32> -> vector<2x128xf32>
    %c2_69 = arith.constant 2 : index
    %c0_70 = arith.constant 0 : index
    %c0_71 = arith.constant 0 : index
    %88 = vector.load %arg8[%c2_69, %c0_70, %c0_71] : memref<4x1x128xf32, #tpu.memory_space<vmem>>, vector<1x1x128xf32>
    %89 = vector.shape_cast %88 : vector<1x1x128xf32> to vector<1x128xf32>
    %90 = vector.broadcast %89 : vector<1x128xf32> to vector<2x128xf32>
    %91 = arith.addf %87, %90 : vector<2x128xf32>
    %c2_72 = arith.constant 2 : index
    %c0_73 = arith.constant 0 : index
    %c0_74 = arith.constant 0 : index
    %92 = vector.load %arg6[%c2_72, %c0_73, %c0_74] : memref<4x128x128xf32, #tpu.memory_space<vmem>>, vector<1x128x128xf32>
    %93 = vector.shape_cast %92 : vector<1x128x128xf32> to vector<128x128xf32>
    %cst_75 = arith.constant dense<0.000000e+00> : vector<16x128xf32>
    %94 = tpu.matmul %82, %93, %cst_75 {dimension_numbers = #tpu.dot_dimension_numbers<[1], [0], [0], [1], [0, 0, 1, 1], [], []>} : vector<16x128xf32>, vector<128x128xf32>, vector<16x128xf32> -> vector<16x128xf32>
    %95 = vector.shape_cast %94 : vector<16x128xf32> to vector<2x8x128xf32>
    %96 = vector.shape_cast %91 : vector<2x128xf32> to vector<2x1x128xf32>
    %97 = vector.broadcast %96 : vector<2x1x128xf32> to vector<2x8x128xf32>
    %98 = arith.addf %95, %97 : vector<2x8x128xf32>
    %cst_76 = arith.constant 0.000000e+00 : f32
    %99 = vector.broadcast %cst_76 : f32 to vector<2x8x128xf32>
    %100 = arith.maximumf %98, %99 : vector<2x8x128xf32>
    %101 = vector.shape_cast %100 : vector<2x8x128xf32> to vector<16x128xf32>
    %c2_77 = arith.constant 2 : index
    %c0_78 = arith.constant 0 : index
    %c0_79 = arith.constant 0 : index
    %102 = vector.load %arg9[%c2_77, %c0_78, %c0_79] : memref<4x128x128xf32, #tpu.memory_space<vmem>>, vector<1x128x128xf32>
    %103 = vector.shape_cast %102 : vector<1x128x128xf32> to vector<128x128xf32>
    %cst_80 = arith.constant dense<0.000000e+00> : vector<16x128xf32>
    %104 = tpu.matmul %101, %103, %cst_80 {dimension_numbers = #tpu.dot_dimension_numbers<[1], [0], [0], [1], [0, 0, 1, 1], [], []>} : vector<16x128xf32>, vector<128x128xf32>, vector<16x128xf32> -> vector<16x128xf32>
    %105 = arith.addf %73, %104 : vector<16x128xf32>
    %c3 = arith.constant 3 : index
    %c0_81 = arith.constant 0 : index
    %c0_82 = arith.constant 0 : index
    %106 = vector.load %arg4[%c3, %c0_81, %c0_82] : memref<4x128x128xf32, #tpu.memory_space<vmem>>, vector<1x128x128xf32>
    %107 = vector.shape_cast %106 : vector<1x128x128xf32> to vector<128x128xf32>
    %cst_83 = arith.constant dense<0.000000e+00> : vector<16x128xf32>
    %108 = tpu.matmul %101, %107, %cst_83 {dimension_numbers = #tpu.dot_dimension_numbers<[1], [0], [0], [1], [0, 0, 1, 1], [], []>} : vector<16x128xf32>, vector<128x128xf32>, vector<16x128xf32> -> vector<16x128xf32>
    %c3_84 = arith.constant 3 : index
    %c0_85 = arith.constant 0 : index
    %c0_86 = arith.constant 0 : index
    %109 = vector.load %arg5[%c3_84, %c0_85, %c0_86] : memref<4x1x128xf32, #tpu.memory_space<vmem>>, vector<1x1x128xf32>
    %110 = vector.shape_cast %109 : vector<1x1x128xf32> to vector<1x128xf32>
    %111 = vector.broadcast %110 : vector<1x128xf32> to vector<16x128xf32>
    %112 = arith.addf %108, %111 : vector<16x128xf32>
    %cst_87 = arith.constant 0.000000e+00 : f32
    %113 = vector.broadcast %cst_87 : f32 to vector<16x128xf32>
    %114 = arith.maximumf %112, %113 : vector<16x128xf32>
    %115 = vector.shape_cast %114 : vector<16x128xf32> to vector<2x8x128xf32>
    %cst_88 = arith.constant dense<0xFF800000> : vector<2x128xf32>
    %116 = vector.multi_reduction <maximumf>, %115, %cst_88 [1] : vector<2x8x128xf32> to vector<2x128xf32>
    %c3_89 = arith.constant 3 : index
    %c0_90 = arith.constant 0 : index
    %c0_91 = arith.constant 0 : index
    %117 = vector.load %arg7[%c3_89, %c0_90, %c0_91] : memref<4x128x128xf32, #tpu.memory_space<vmem>>, vector<1x128x128xf32>
    %118 = vector.shape_cast %117 : vector<1x128x128xf32> to vector<128x128xf32>
    %cst_92 = arith.constant dense<0.000000e+00> : vector<2x128xf32>
    %119 = tpu.matmul %116, %118, %cst_92 {dimension_numbers = #tpu.dot_dimension_numbers<[1], [0], [0], [1], [0, 0, 1, 1], [], []>} : vector<2x128xf32>, vector<128x128xf32>, vector<2x128xf32> -> vector<2x128xf32>
    %c3_93 = arith.constant 3 : index
    %c0_94 = arith.constant 0 : index
    %c0_95 = arith.constant 0 : index
    %120 = vector.load %arg8[%c3_93, %c0_94, %c0_95] : memref<4x1x128xf32, #tpu.memory_space<vmem>>, vector<1x1x128xf32>
    %121 = vector.shape_cast %120 : vector<1x1x128xf32> to vector<1x128xf32>
    %122 = vector.broadcast %121 : vector<1x128xf32> to vector<2x128xf32>
    %123 = arith.addf %119, %122 : vector<2x128xf32>
    %c3_96 = arith.constant 3 : index
    %c0_97 = arith.constant 0 : index
    %c0_98 = arith.constant 0 : index
    %124 = vector.load %arg6[%c3_96, %c0_97, %c0_98] : memref<4x128x128xf32, #tpu.memory_space<vmem>>, vector<1x128x128xf32>
    %125 = vector.shape_cast %124 : vector<1x128x128xf32> to vector<128x128xf32>
    %cst_99 = arith.constant dense<0.000000e+00> : vector<16x128xf32>
    %126 = tpu.matmul %114, %125, %cst_99 {dimension_numbers = #tpu.dot_dimension_numbers<[1], [0], [0], [1], [0, 0, 1, 1], [], []>} : vector<16x128xf32>, vector<128x128xf32>, vector<16x128xf32> -> vector<16x128xf32>
    %127 = vector.shape_cast %126 : vector<16x128xf32> to vector<2x8x128xf32>
    %128 = vector.shape_cast %123 : vector<2x128xf32> to vector<2x1x128xf32>
    %129 = vector.broadcast %128 : vector<2x1x128xf32> to vector<2x8x128xf32>
    %130 = arith.addf %127, %129 : vector<2x8x128xf32>
    %cst_100 = arith.constant 0.000000e+00 : f32
    %131 = vector.broadcast %cst_100 : f32 to vector<2x8x128xf32>
    %132 = arith.maximumf %130, %131 : vector<2x8x128xf32>
    %133 = vector.shape_cast %132 : vector<2x8x128xf32> to vector<16x128xf32>
    %c3_101 = arith.constant 3 : index
    %c0_102 = arith.constant 0 : index
    %c0_103 = arith.constant 0 : index
    %134 = vector.load %arg9[%c3_101, %c0_102, %c0_103] : memref<4x128x128xf32, #tpu.memory_space<vmem>>, vector<1x128x128xf32>
    %135 = vector.shape_cast %134 : vector<1x128x128xf32> to vector<128x128xf32>
    %cst_104 = arith.constant dense<0.000000e+00> : vector<16x128xf32>
    %136 = tpu.matmul %133, %135, %cst_104 {dimension_numbers = #tpu.dot_dimension_numbers<[1], [0], [0], [1], [0, 0, 1, 1], [], []>} : vector<16x128xf32>, vector<128x128xf32>, vector<16x128xf32> -> vector<16x128xf32>
    %137 = arith.addf %105, %136 : vector<16x128xf32>
    %138 = vector.shape_cast %137 : vector<16x128xf32> to vector<2x8x128xf32>
    %cst_105 = arith.constant dense<0xFF800000> : vector<2x128xf32>
    %139 = vector.multi_reduction <maximumf>, %138, %cst_105 [1] : vector<2x8x128xf32> to vector<2x128xf32>
    %c0_106 = arith.constant 0 : index
    %c0_107 = arith.constant 0 : index
    %140 = vector.load %arg10[%c0_106, %c0_107] : memref<1x128xf32, #tpu.memory_space<vmem>>, vector<1x128xf32>
    %141 = vector.broadcast %140 : vector<1x128xf32> to vector<2x128xf32>
    %142 = arith.addf %139, %141 : vector<2x128xf32>
    %c0_108 = arith.constant 0 : index
    %c0_109 = arith.constant 0 : index
    %143 = vector.load %arg11[%c0_108, %c0_109] : memref<2x128xf32, #tpu.memory_space<vmem>>, vector<2x128xf32>
    tpu.vector_store %arg11[%c0_108, %c0_109], %142 {strides = array<i32>} : memref<2x128xf32, #tpu.memory_space<vmem>>, vector<2x128xf32>,
    return
  }
  func.func @transform_0(%arg0: i32) -> (i32, i32, i32) {
    %c0_i32 = arith.constant 0 : i32
    %c0_i32_0 = arith.constant 0 : i32
    %c0_i32_1 = arith.constant 0 : i32
    return %arg0, %c0_i32, %c0_i32_0 : i32, i32, i32
  }
  func.func @transform_1(%arg0: i32) -> (i32, i32) {
    %c0_i32 = arith.constant 0 : i32
    %c0_i32_0 = arith.constant 0 : i32
    %c0_i32_1 = arith.constant 0 : i32
    return %c0_i32, %c0_i32_0 : i32, i32
  }
  func.func @transform_2(%arg0: i32) -> (i32, i32) {
    %c0_i32 = arith.constant 0 : i32
    %c0_i32_0 = arith.constant 0 : i32
    %c0_i32_1 = arith.constant 0 : i32
    return %c0_i32, %c0_i32_0 : i32, i32
  }
  func.func @transform_3(%arg0: i32) -> (i32, i32, i32) {
    %c0_i32 = arith.constant 0 : i32
    %c0_i32_0 = arith.constant 0 : i32
    %c0_i32_1 = arith.constant 0 : i32
    %c0_i32_2 = arith.constant 0 : i32
    return %c0_i32, %c0_i32_0, %c0_i32_1 : i32, i32, i32
  }
  func.func @transform_4(%arg0: i32) -> (i32, i32, i32) {
    %c0_i32 = arith.constant 0 : i32
    %c0_i32_0 = arith.constant 0 : i32
    %c0_i32_1 = arith.constant 0 : i32
    %c0_i32_2 = arith.constant 0 : i32
    return %c0_i32, %c0_i32_0, %c0_i32_1 : i32, i32, i32
  }
  func.func @transform_5(%arg0: i32) -> (i32, i32, i32) {
    %c0_i32 = arith.constant 0 : i32
    %c0_i32_0 = arith.constant 0 : i32
    %c0_i32_1 = arith.constant 0 : i32
    %c0_i32_2 = arith.constant 0 : i32
    return %c0_i32, %c0_i32_0, %c0_i32_1 : i32, i32, i32
  }
  func.func @transform_6(%arg0: i32) -> (i32, i32, i32) {
    %c0_i32 = arith.constant 0 : i32
    %c0_i32_0 = arith.constant 0 : i32
    %c0_i32_1 = arith.constant 0 : i32
    %c0_i32_2 = arith.constant 0 : i32
    return %c0_i32, %c0_i32_0, %c0_i32_1 : i32, i32, i32
  }
  func.func @transform_7(%arg0: i32) -> (i32, i32, i32) {
    %c0_i32 = arith.constant 0 : i32
    %c0_i32_0 = arith.constant 0 : i32
    %c0_i32_1 = arith.constant 0 : i32
    %c0_i32_2 = arith.constant 0 : i32
    return %c0_i32, %c0_i32_0, %c0_i32_1 : i32, i32, i32
  }
  func.func @transform_8(%arg0: i32) -> (i32, i32, i32) {
    %c0_i32 = arith.constant 0 : i32
    %c0_i32_0 = arith.constant 0 : i32
    %c0_i32_1 = arith.constant 0 : i32
    %c0_i32_2 = arith.constant 0 : i32
    return %c0_i32, %c0_i32_0, %c0_i32_1 : i32, i32, i32
  }
  func.func @transform_9(%arg0: i32) -> (i32, i32) {
    %c0_i32 = arith.constant 0 : i32
    %c0_i32_0 = arith.constant 0 : i32
    %c0_i32_1 = arith.constant 0 : i32
    return %c0_i32, %c0_i32_0 : i32, i32
  }
  func.func @transform_10(%arg0: i32) -> (i32, i32) {
    %c0_i32 = arith.constant 0 : i32
    %c0_i32_0 = arith.constant 0 : i32
    return %arg0, %c0_i32 : i32, i32
  }
}

</mosaic_0001>

<llo_original>
// kernel: tpu_custom_call.1
$region0: #{tpu_custom_call.1}
  #allocation0 [shape = 'u32[]', space=smem, size = 0x4, offset = 0x4, fixed_abs, tag = 'smem constant byte address 0x4 - core index']
  #allocation1 [shape = 'u32[144,128]{1,0:T(1,128)}', space=vmem, size = 0x12000, scoped, tag = 'internal scratch']
  %s0 = inlined_call_operand.vmem [shape: f32[2,8,4], index: 0, kind: input, shape index: {}]
  %s1 = inlined_call_operand.vmem [shape: f32[4,128], index: 1, kind: input, shape index: {}]
  %s2 = inlined_call_operand.vmem [shape: f32[1,128], index: 2, kind: input, shape index: {}]
  %s3 = inlined_call_operand.hbm [shape: f32[4,128,128], index: 3, kind: input, shape index: {}]
  %s4 = inlined_call_operand.vmem [shape: f32[4,1,128], index: 4, kind: input, shape index: {}]
  %s5 = inlined_call_operand.hbm [shape: f32[4,128,128], index: 5, kind: input, shape index: {}]
  %s6 = inlined_call_operand.hbm [shape: f32[4,128,128], index: 6, kind: input, shape index: {}]
  %s7 = inlined_call_operand.vmem [shape: f32[4,1,128], index: 7, kind: input, shape index: {}]
  %s8 = inlined_call_operand.hbm [shape: f32[4,128,128], index: 8, kind: input, shape index: {}]
  %s9 = inlined_call_operand.vmem [shape: f32[1,128], index: 9, kind: input, shape index: {}]
  %s10 = inlined_call_operand.hbm [shape: f32[2,128], index: 10, kind: output, shape index: {}]
  %s11 = sld [smem:[#allocation0]]
  $region66: #{tpu_custom_call.1} parent=0
    _
  %s13 = ssub.s32 1, %s11
  %s14 = scalar_select 0, %s13, %s11
  $region1: #{tpu_custom_call.1} parent=0
    #allocation2 [shape = 'u8[262144]{0}', space=vmem, size = 0x40000, scoped, tag = 'input window, operand 3, single buffered']
    #allocation3 [shape = 's32[1]{0}', space=sflag, size = 0x4, scoped, tag = 'scoped memory for tpu_custom_call.1']
    #allocation4 [shape = 's32[1]{0}', space=sflag, size = 0x4, scoped, tag = 'scoped memory for tpu_custom_call.1']
    #allocation5 [shape = 'u8[262144]{0}', space=vmem, size = 0x40000, scoped, tag = 'input window, operand 5, single buffered']
    #allocation6 [shape = 's32[1]{0}', space=sflag, size = 0x4, scoped, tag = 'scoped memory for tpu_custom_call.1']
    #allocation7 [shape = 'u8[262144]{0}', space=vmem, size = 0x40000, scoped, tag = 'input window, operand 6, single buffered']
    #allocation8 [shape = 'u8[262144]{0}', space=vmem, size = 0x40000, scoped, tag = 'input window, operand 8, single buffered']
    #allocation9 [shape = 's32[1]{0}', space=sflag, size = 0x4, scoped, tag = 'scoped memory for tpu_custom_call.1']
    #allocation10 [shape = 'u8[1024]{0}', space=vmem, size = 0x400, scoped, tag = 'output window, operand 0, single buffered']
    %15 = vsyncpa [#allocation3], 0
    %16 = vsyncpa [#allocation6], 0
    %17 = vsyncpa [#allocation9], 0
    %18 = vsyncpa [#allocation4], 0
    // Predicated region
    $region2: #{tpu_custom_call.1} parent=1 // pred_check
      _
    $region3: #{tpu_custom_call.1} parent=1 // pred_check_branch
      %20 = sbr.rel (0) target = $region5
    $region4: #{tpu_custom_call.1} parent=1 // pred_region
      _
    $region5: #{tpu_custom_call.1} parent=1 // pred_fallthru
      _
    // Predicated region
    $region6: #{tpu_custom_call.1} parent=1 // pred_check
      _
    $region7: #{tpu_custom_call.1} parent=1 // pred_check_branch
      %22 = sbr.rel (0) target = $region9
    $region8: #{tpu_custom_call.1} parent=1 // pred_region
      _
    $region9: #{tpu_custom_call.1} parent=1 // pred_fallthru
      _
    // Predicated region
    $region10: #{tpu_custom_call.1} parent=1 // pred_check
      _
    $region11: #{tpu_custom_call.1} parent=1 // pred_check_branch
      %24 = sbr.rel (0) target = $region13
    $region12: #{tpu_custom_call.1} parent=1 // pred_region
      _
    $region13: #{tpu_custom_call.1} parent=1 // pred_fallthru
      _
    // Predicated region
    $region14: #{tpu_custom_call.1} parent=1 // pred_check
      _
    $region15: #{tpu_custom_call.1} parent=1 // pred_check_branch
      %26 = sbr.rel (0) target = $region17
    $region16: #{tpu_custom_call.1} parent=1 // pred_region
      %s28 = ssub.s32 8192, 8192
      %29 = vsyncadd [#allocation3], %s28
      %s30 = sshll.u32 [#allocation2], 4
      %s31 = int_to_ptr.vmem [resolvable:$true] %s30
      %36 = dma.hbm_to_vmem [thread:$0]  %s3, 8192, %s31, [#allocation3], 128, 128, 8
    $region17: #{tpu_custom_call.1} parent=1 // pred_fallthru
      _
    // Predicated region
    $region18: #{tpu_custom_call.1} parent=1 // pred_check
      _
    $region19: #{tpu_custom_call.1} parent=1 // pred_check_branch
      %38 = sbr.rel (0) target = $region21
    $region20: #{tpu_custom_call.1} parent=1 // pred_region
      _
    $region21: #{tpu_custom_call.1} parent=1 // pred_fallthru
      _
    // Predicated region
    $region22: #{tpu_custom_call.1} parent=1 // pred_check
      _
    $region23: #{tpu_custom_call.1} parent=1 // pred_check_branch
      %40 = sbr.rel (0) target = $region25
    $region24: #{tpu_custom_call.1} parent=1 // pred_region
      %s42 = ssub.s32 8192, 8192
      %43 = vsyncadd [#allocation6], %s42
      %s44 = sshll.u32 [#allocation5], 4
      %s45 = int_to_ptr.vmem [resolvable:$true] %s44
      %50 = dma.hbm_to_vmem [thread:$0]  %s5, 8192, %s45, [#allocation6], 128, 128, 8
    $region25: #{tpu_custom_call.1} parent=1 // pred_fallthru
      _
    // Predicated region
    $region26: #{tpu_custom_call.1} parent=1 // pred_check
      _
    $region27: #{tpu_custom_call.1} parent=1 // pred_check_branch
      %52 = sbr.rel (0) target = $region29
    $region28: #{tpu_custom_call.1} parent=1 // pred_region
      %s54 = ssub.s32 8192, 8192
      %55 = vsyncadd [#allocation6], %s54
      %s56 = sshll.u32 [#allocation7], 4
      %s57 = int_to_ptr.vmem [resolvable:$true] %s56
      %62 = dma.hbm_to_vmem [thread:$0]  %s6, 8192, %s57, [#allocation6], 128, 128, 8
    $region29: #{tpu_custom_call.1} parent=1 // pred_fallthru
      _
    // Predicated region
    $region30: #{tpu_custom_call.1} parent=1 // pred_check
      _
    $region31: #{tpu_custom_call.1} parent=1 // pred_check_branch
      %64 = sbr.rel (0) target = $region33
    $region32: #{tpu_custom_call.1} parent=1 // pred_region
      _
    $region33: #{tpu_custom_call.1} parent=1 // pred_fallthru
      _
    // Predicated region
    $region34: #{tpu_custom_call.1} parent=1 // pred_check
      _
    $region35: #{tpu_custom_call.1} parent=1 // pred_check_branch
      %66 = sbr.rel (0) target = $region37
    $region36: #{tpu_custom_call.1} parent=1 // pred_region
      %s68 = ssub.s32 8192, 8192
      %69 = vsyncadd [#allocation9], %s68
      %s70 = sshll.u32 [#allocation8], 4
      %s71 = int_to_ptr.vmem [resolvable:$true] %s70
      %76 = dma.hbm_to_vmem [thread:$0]  %s8, 8192, %s71, [#allocation9], 128, 128, 8
    $region37: #{tpu_custom_call.1} parent=1 // pred_fallthru
      _
    // Predicated region
    $region38: #{tpu_custom_call.1} parent=1 // pred_check
      _
    $region39: #{tpu_custom_call.1} parent=1 // pred_check_branch
      %78 = sbr.rel (0) target = $region41
    $region40: #{tpu_custom_call.1} parent=1 // pred_region
      _
    $region41: #{tpu_custom_call.1} parent=1 // pred_fallthru
      _
    // Predicated region
    $region42: #{tpu_custom_call.1} parent=1 // pred_check
      _
    $region43: #{tpu_custom_call.1} parent=1 // pred_check_branch
      %80 = sbr.rel (0) target = $region45
    $region44: #{tpu_custom_call.1} parent=1 // pred_region
      %81 = dma.done [#allocation3], 8192
    $region45: #{tpu_custom_call.1} parent=1 // pred_fallthru
      _
    // Predicated region
    $region46: #{tpu_custom_call.1} parent=1 // pred_check
      _
    $region47: #{tpu_custom_call.1} parent=1 // pred_check_branch
      %83 = sbr.rel (0) target = $region49
    $region48: #{tpu_custom_call.1} parent=1 // pred_region
      %84 = dma.done [#allocation6], 8192
    $region49: #{tpu_custom_call.1} parent=1 // pred_fallthru
      _
    // Predicated region
    $region50: #{tpu_custom_call.1} parent=1 // pred_check
      _
    $region51: #{tpu_custom_call.1} parent=1 // pred_check_branch
      %86 = sbr.rel (0) target = $region53
    $region52: #{tpu_custom_call.1} parent=1 // pred_region
      %87 = dma.done [#allocation6], 8192
    $region53: #{tpu_custom_call.1} parent=1 // pred_fallthru
      _
    // Predicated region
    $region54: #{tpu_custom_call.1} parent=1 // pred_check
      _
    $region55: #{tpu_custom_call.1} parent=1 // pred_check_branch
      %89 = sbr.rel (0) target = $region57
    $region56: #{tpu_custom_call.1} parent=1 // pred_region
      %90 = dma.done [#allocation9], 8192
    $region57: #{tpu_custom_call.1} parent=1 // pred_fallthru
      _
    %v91 = vld [vmem:[%s0] sm:$0xff]
    %v92 = vld [vmem:[%s0 + $0x8] sm:$0xff]
    %v93 = vld [vmem:[%s1] sm:$0xf]
    %v94 = vld [vmem:[%s2] sm:$0x1]
    %v96 = vlaneseq
    %v97 = vshrl.u32 %v96, 7
    %v98 = vsub.s32 0, %v97
    %v99 = vrot.slane %v94, %v98
    %vm101 = vcmask 31744
    %v103 = vsel %vm101, %v91, 0
    %v106 = vsel %vm101, %v92, 0
    %vm108 = vcmask 1043456
    %v110 = vsel %vm108, %v93, 0
    %112 = vmatprep.subr.mxu0 0.0
    %113 = vmatpush1.msra.mxu0 %v110
    %114 = vmatprep.subr.mxu0 0.0
    %115 = vmatpush1.msra.mxu0 0.0
    %116 = vmatprep.subr.mxu0 0.0
    %117 = vmatpush1.msra.mxu0 0.0
    %118 = vmatprep.subr.mxu0 0.0
    %119 = vmatpush1.msra.mxu0 0.0
    %120 = vmatprep.subr.mxu0 0.0
    %121 = vmatpush1.msra.mxu0 0.0
    %122 = vmatprep.subr.mxu0 0.0
    %123 = vmatpush1.msra.mxu0 0.0
    %124 = vmatprep.subr.mxu0 0.0
    %125 = vmatpush1.msra.mxu0 0.0
    %126 = vmatprep.subr.mxu0 0.0
    %127 = vmatpush1.msra.mxu0 0.0
    %128 = vmatprep.subr.mxu0 0.0
    %129 = vmatpush1.msra.mxu0 0.0
    %130 = vmatprep.subr.mxu0 0.0
    %131 = vmatpush1.msra.mxu0 0.0
    %132 = vmatprep.subr.mxu0 0.0
    %133 = vmatpush1.msra.mxu0 0.0
    %134 = vmatprep.subr.mxu0 0.0
    %135 = vmatpush1.msra.mxu0 0.0
    %136 = vmatprep.subr.mxu0 0.0
    %137 = vmatpush1.msra.mxu0 0.0
    %138 = vmatprep.subr.mxu0 0.0
    %139 = vmatpush1.msra.mxu0 0.0
    %140 = vmatprep.subr.mxu0 0.0
    %141 = vmatpush1.msra.mxu0 0.0
    %142 = vmatprep.subr.mxu0 0.0
    %143 = vmatpush1.msra.mxu0 0.0
    %144 = vmatprep.subr.mxu0 0.0
    %145 = vmatpush1.msra.mxu0 0.0
    %146 = vmatprep.subr.mxu0 0.0
    %147 = vmatpush1.msra.mxu0 0.0
    %148 = vmatprep.subr.mxu0 0.0
    %149 = vmatpush1.msra.mxu0 0.0
    %150 = vmatprep.subr.mxu0 0.0
    %151 = vmatpush1.msra.mxu0 0.0
    %152 = vmatprep.subr.mxu0 0.0
    %153 = vmatpush1.msra.mxu0 0.0
    %154 = vmatprep.subr.mxu0 0.0
    %155 = vmatpush1.msra.mxu0 0.0
    %156 = vmatprep.subr.mxu0 0.0
    %157 = vmatpush1.msra.mxu0 0.0
    %158 = vmatprep.subr.mxu0 0.0
    %159 = vmatpush1.msra.mxu0 0.0
    %160 = vmatprep.subr.mxu0 0.0
    %161 = vmatpush1.msra.mxu0 0.0
    %162 = vmatprep.subr.mxu0 0.0
    %163 = vmatpush1.msra.mxu0 0.0
    %164 = vmatprep.subr.mxu0 0.0
    %165 = vmatpush1.msra.mxu0 0.0
    %166 = vmatprep.subr.mxu0 0.0
    %167 = vmatpush1.msra.mxu0 0.0
    %168 = vmatprep.subr.mxu0 0.0
    %169 = vmatpush1.msra.mxu0 0.0
    %170 = vmatprep.subr.mxu0 0.0
    %171 = vmatpush1.msra.mxu0 0.0
    %172 = vmatprep.subr.mxu0 0.0
    %173 = vmatpush1.msra.mxu0 0.0
    %174 = vmatprep.subr.mxu0 0.0
    %175 = vmatpush1.msra.mxu0 0.0
    %176 = vmatprep.mubr.f32.mxu0 0.0
    %177 = vmatmul.mubr.f32.gmra.mrb[0].mxu0 %v103
    %v178 = vpop.f32.mrb[0].mxu0
    %v179 = vadd.f32 %v99, %v178
    %v180 = vpop.f32.mrb[0].mxu0
    %181 = vmatprep.mubr.f32.mxu0 0.0
    %182 = vmatmul.mubr.f32.gmra.mrb[0].mxu0 %v106
    %v183 = vpop.f32.mrb[0].mxu0
    %v184 = vadd.f32 %v99, %v183
    %v185 = vpop.f32.mrb[0].mxu0
    %186 = vdwg.mxu0
    %v187 = vmax.f32 %v179, 0.0
    %v188 = vmax.f32 %v184, 0.0
    %v189 = vld [vmem:[#allocation2] sm:$0xff]
    %v190 = vld [vmem:[#allocation2 + $0x8] sm:$0xff]
    %v191 = vld [vmem:[#allocation2 + $0x10] sm:$0xff]
    %v192 = vld [vmem:[#allocation2 + $0x18] sm:$0xff]
    %v193 = vld [vmem:[#allocation2 + $0x20] sm:$0xff]
    %v194 = vld [vmem:[#allocation2 + $0x28] sm:$0xff]
    %v195 = vld [vmem:[#allocation2 + $0x30] sm:$0xff]
    %v196 = vld [vmem:[#allocation2 + $0x38] sm:$0xff]
    %v197 = vld [vmem:[#allocation2 + $0x40] sm:$0xff]
    %v198 = vld [vmem:[#allocation2 + $0x48] sm:$0xff]
    %v199 = vld [vmem:[#allocation2 + $0x50] sm:$0xff]
    %v200 = vld [vmem:[#allocation2 + $0x58] sm:$0xff]
    %v201 = vld [vmem:[#allocation2 + $0x60] sm:$0xff]
    %v202 = vld [vmem:[#allocation2 + $0x68] sm:$0xff]
    %v203 = vld [vmem:[#allocation2 + $0x70] sm:$0xff]
    %v204 = vld [vmem:[#allocation2 + $0x78] sm:$0xff]
    %v205 = vld [vmem:[%s4] sm:$0x1]
    %v207 = vlaneseq
    %v208 = vshrl.u32 %v207, 7
    %v209 = vsub.s32 0, %v208
    %v210 = vrot.slane %v205, %v209
    %212 = vmatprep.subr.mxu0 0.0
    %213 = vmatpush1.msra.mxu0 %v189
    %214 = vmatprep.subr.mxu0 0.0
    %215 = vmatpush1.msra.mxu0 %v190
    %216 = vmatprep.subr.mxu0 0.0
    %217 = vmatpush1.msra.mxu0 %v191
    %218 = vmatprep.subr.mxu0 0.0
    %219 = vmatpush1.msra.mxu0 %v192
    %220 = vmatprep.subr.mxu0 0.0
    %221 = vmatpush1.msra.mxu0 %v193
    %222 = vmatprep.subr.mxu0 0.0
    %223 = vmatpush1.msra.mxu0 %v194
    %224 = vmatprep.subr.mxu0 0.0
    %225 = vmatpush1.msra.mxu0 %v195
    %226 = vmatprep.subr.mxu0 0.0
    %227 = vmatpush1.msra.mxu0 %v196
    %228 = vmatprep.subr.mxu0 0.0
    %229 = vmatpush1.msra.mxu0 %v197
    %230 = vmatprep.subr.mxu0 0.0
    %231 = vmatpush1.msra.mxu0 %v198
    %232 = vmatprep.subr.mxu0 0.0
    %233 = vmatpush1.msra.mxu0 %v199
    %234 = vmatprep.subr.mxu0 0.0
    %235 = vmatpush1.msra.mxu0 %v200
    %236 = vmatprep.subr.mxu0 0.0
    %237 = vmatpush1.msra.mxu0 %v201
    %238 = vmatprep.subr.mxu0 0.0
    %239 = vmatpush1.msra.mxu0 %v202
    %240 = vmatprep.subr.mxu0 0.0
    %241 = vmatpush1.msra.mxu0 %v203
    %242 = vmatprep.subr.mxu0 0.0
    %243 = vmatpush1.msra.mxu0 %v204
    %244 = vmatprep.subr.mxu0 0.0
    %245 = vmatpush1.msra.mxu0 0.0
    %246 = vmatprep.subr.mxu0 0.0
    %247 = vmatpush1.msra.mxu0 0.0
    %248 = vmatprep.subr.mxu0 0.0
    %249 = vmatpush1.msra.mxu0 0.0
    %250 = vmatprep.subr.mxu0 0.0
    %251 = vmatpush1.msra.mxu0 0.0
    %252 = vmatprep.subr.mxu0 0.0
    %253 = vmatpush1.msra.mxu0 0.0
    %254 = vmatprep.subr.mxu0 0.0
    %255 = vmatpush1.msra.mxu0 0.0
    %256 = vmatprep.subr.mxu0 0.0
    %257 = vmatpush1.msra.mxu0 0.0
    %258 = vmatprep.subr.mxu0 0.0
    %259 = vmatpush1.msra.mxu0 0.0
    %260 = vmatprep.subr.mxu0 0.0
    %261 = vmatpush1.msra.mxu0 0.0
    %262 = vmatprep.subr.mxu0 0.0
    %263 = vmatpush1.msra.mxu0 0.0
    %264 = vmatprep.subr.mxu0 0.0
    %265 = vmatpush1.msra.mxu0 0.0
    %266 = vmatprep.subr.mxu0 0.0
    %267 = vmatpush1.msra.mxu0 0.0
    %268 = vmatprep.subr.mxu0 0.0
    %269 = vmatpush1.msra.mxu0 0.0
    %270 = vmatprep.subr.mxu0 0.0
    %271 = vmatpush1.msra.mxu0 0.0
    %272 = vmatprep.subr.mxu0 0.0
    %273 = vmatpush1.msra.mxu0 0.0
    %274 = vmatprep.subr.mxu0 0.0
    %275 = vmatpush1.msra.mxu0 0.0
    %276 = vmatprep.mubr.f32.mxu0 0.0
    %277 = vmatmul.mubr.f32.gmra.mrb[0].mxu0 %v187
    %v278 = vpop.f32.mrb[0].mxu0
    %v279 = vadd.f32 %v210, %v278
    %v280 = vpop.f32.mrb[0].mxu0
    %281 = vmatprep.mubr.f32.mxu0 0.0
    %282 = vmatmul.mubr.f32.gmra.mrb[0].mxu0 %v188
    %v283 = vpop.f32.mrb[0].mxu0
    %v284 = vadd.f32 %v210, %v283
    %v285 = vpop.f32.mrb[0].mxu0
    %286 = vdwg.mxu0
    %v287 = vmax.f32 %v279, 0.0
    %v288 = vmax.f32 %v284, 0.0
    %v289 = vrot.slane %v287, 4
    %v290 = vmax.f32 %v287, %v289
    %v291 = vrot.slane %v290, 2
    %v292 = vmax.f32 %v290, %v291
    %v293 = vrot.slane %v292, 1
    %v294 = vmax.f32 %v292, %v293
    %v295 = vrot.slane %v288, 4
    %v296 = vmax.f32 %v288, %v295
    %v297 = vrot.slane %v296, 2
    %v298 = vmax.f32 %v296, %v297
    %v299 = vrot.slane %v298, 1
    %v300 = vmax.f32 %v298, %v299
    %v301 = vld [vmem:[#allocation7] sm:$0xff]
    %v302 = vld [vmem:[#allocation7 + $0x8] sm:$0xff]
    %v303 = vld [vmem:[#allocation7 + $0x10] sm:$0xff]
    %v304 = vld [vmem:[#allocation7 + $0x18] sm:$0xff]
    %v305 = vld [vmem:[#allocation7 + $0x20] sm:$0xff]
    %v306 = vld [vmem:[#allocation7 + $0x28] sm:$0xff]
    %v307 = vld [vmem:[#allocation7 + $0x30] sm:$0xff]
    %v308 = vld [vmem:[#allocation7 + $0x38] sm:$0xff]
    %v309 = vld [vmem:[#allocation7 + $0x40] sm:$0xff]
    %v310 = vld [vmem:[#allocation7 + $0x48] sm:$0xff]
    %v311 = vld [vmem:[#allocation7 + $0x50] sm:$0xff]
    %v312 = vld [vmem:[#allocation7 + $0x58] sm:$0xff]
    %v313 = vld [vmem:[#allocation7 + $0x60] sm:$0xff]
    %v314 = vld [vmem:[#allocation7 + $0x68] sm:$0xff]
    %v315 = vld [vmem:[#allocation7 + $0x70] sm:$0xff]
    %v316 = vld [vmem:[#allocation7 + $0x78] sm:$0xff]
    %v317 = vld [vmem:[%s7] sm:$0x1]
    %v319 = vlaneseq
    %v320 = vshrl.u32 %v319, 7
    %v321 = vsub.s32 0, %v320
    %v322 = vrot.slane %v317, %v321
    %vm326 = vcmask 1041409
    %v327 = vsel %vm326, %v300, %v294
    %329 = vmatprep.subr.mxu0 0.0
    %330 = vmatpush1.msra.mxu0 %v301
    %331 = vmatprep.subr.mxu0 0.0
    %332 = vmatpush1.msra.mxu0 %v302
    %333 = vmatprep.subr.mxu0 0.0
    %334 = vmatpush1.msra.mxu0 %v303
    %335 = vmatprep.subr.mxu0 0.0
    %336 = vmatpush1.msra.mxu0 %v304
    %337 = vmatprep.subr.mxu0 0.0
    %338 = vmatpush1.msra.mxu0 %v305
    %339 = vmatprep.subr.mxu0 0.0
    %340 = vmatpush1.msra.mxu0 %v306
    %341 = vmatprep.subr.mxu0 0.0
    %342 = vmatpush1.msra.mxu0 %v307
    %343 = vmatprep.subr.mxu0 0.0
    %344 = vmatpush1.msra.mxu0 %v308
    %345 = vmatprep.subr.mxu0 0.0
    %346 = vmatpush1.msra.mxu0 %v309
    %347 = vmatprep.subr.mxu0 0.0
    %348 = vmatpush1.msra.mxu0 %v310
    %349 = vmatprep.subr.mxu0 0.0
    %350 = vmatpush1.msra.mxu0 %v311
    %351 = vmatprep.subr.mxu0 0.0
    %352 = vmatpush1.msra.mxu0 %v312
    %353 = vmatprep.subr.mxu0 0.0
    %354 = vmatpush1.msra.mxu0 %v313
    %355 = vmatprep.subr.mxu0 0.0
    %356 = vmatpush1.msra.mxu0 %v314
    %357 = vmatprep.subr.mxu0 0.0
    %358 = vmatpush1.msra.mxu0 %v315
    %359 = vmatprep.subr.mxu0 0.0
    %360 = vmatpush1.msra.mxu0 %v316
    %361 = vmatprep.subr.mxu0 0.0
    %362 = vmatpush1.msra.mxu0 0.0
    %363 = vmatprep.subr.mxu0 0.0
    %364 = vmatpush1.msra.mxu0 0.0
    %365 = vmatprep.subr.mxu0 0.0
    %366 = vmatpush1.msra.mxu0 0.0
    %367 = vmatprep.subr.mxu0 0.0
    %368 = vmatpush1.msra.mxu0 0.0
    %369 = vmatprep.subr.mxu0 0.0
    %370 = vmatpush1.msra.mxu0 0.0
    %371 = vmatprep.subr.mxu0 0.0
    %372 = vmatpush1.msra.mxu0 0.0
    %373 = vmatprep.subr.mxu0 0.0
    %374 = vmatpush1.msra.mxu0 0.0
    %375 = vmatprep.subr.mxu0 0.0
    %376 = vmatpush1.msra.mxu0 0.0
    %377 = vmatprep.subr.mxu0 0.0
    %378 = vmatpush1.msra.mxu0 0.0
    %379 = vmatprep.subr.mxu0 0.0
    %380 = vmatpush1.msra.mxu0 0.0
    %381 = vmatprep.subr.mxu0 0.0
    %382 = vmatpush1.msra.mxu0 0.0
    %383 = vmatprep.subr.mxu0 0.0
    %384 = vmatpush1.msra.mxu0 0.0
    %385 = vmatprep.subr.mxu0 0.0
    %386 = vmatpush1.msra.mxu0 0.0
    %387 = vmatprep.subr.mxu0 0.0
    %388 = vmatpush1.msra.mxu0 0.0
    %389 = vmatprep.subr.mxu0 0.0
    %390 = vmatpush1.msra.mxu0 0.0
    %391 = vmatprep.subr.mxu0 0.0
    %392 = vmatpush1.msra.mxu0 0.0
    %393 = vmatprep.mubr.f32.mxu0 0.0
    %394 = vmatmul.mubr.f32.gmra.mrb[0].mxu0 %v327
    %v395 = vpop.f32.mrb[0].mxu0
    %v396 = vadd.f32 %v322, %v395
    %v397 = vpop.f32.mrb[0].mxu0
    %398 = vdwg.mxu0
    %v399 = vld [vmem:[#allocation5] sm:$0xff]
    %v400 = vld [vmem:[#allocation5 + $0x8] sm:$0xff]
    %v401 = vld [vmem:[#allocation5 + $0x10] sm:$0xff]
    %v402 = vld [vmem:[#allocation5 + $0x18] sm:$0xff]
    %v403 = vld [vmem:[#allocation5 + $0x20] sm:$0xff]
    %v404 = vld [vmem:[#allocation5 + $0x28] sm:$0xff]
    %v405 = vld [vmem:[#allocation5 + $0x30] sm:$0xff]
    %v406 = vld [vmem:[#allocation5 + $0x38] sm:$0xff]
    %v407 = vld [vmem:[#allocation5 + $0x40] sm:$0xff]
    %v408 = vld [vmem:[#allocation5 + $0x48] sm:$0xff]
    %v409 = vld [vmem:[#allocation5 + $0x50] sm:$0xff]
    %v410 = vld [vmem:[#allocation5 + $0x58] sm:$0xff]
    %v411 = vld [vmem:[#allocation5 + $0x60] sm:$0xff]
    %v412 = vld [vmem:[#allocation5 + $0x68] sm:$0xff]
    %v413 = vld [vmem:[#allocation5 + $0x70] sm:$0xff]
    %v414 = vld [vmem:[#allocation5 + $0x78] sm:$0xff]
    %415 = vmatprep.subr.mxu0 0.0
    %416 = vmatpush1.msra.mxu0 %v399
    %417 = vmatprep.subr.mxu0 0.0
    %418 = vmatpush1.msra.mxu0 %v400
    %419 = vmatprep.subr.mxu0 0.0
    %420 = vmatpush1.msra.mxu0 %v401
    %421 = vmatprep.subr.mxu0 0.0
    %422 = vmatpush1.msra.mxu0 %v402
    %423 = vmatprep.subr.mxu0 0.0
    %424 = vmatpush1.msra.mxu0 %v403
    %425 = vmatprep.subr.mxu0 0.0
    %426 = vmatpush1.msra.mxu0 %v404
    %427 = vmatprep.subr.mxu0 0.0
    %428 = vmatpush1.msra.mxu0 %v405
    %429 = vmatprep.subr.mxu0 0.0
    %430 = vmatpush1.msra.mxu0 %v406
    %431 = vmatprep.subr.mxu0 0.0
    %432 = vmatpush1.msra.mxu0 %v407
    %433 = vmatprep.subr.mxu0 0.0
    %434 = vmatpush1.msra.mxu0 %v408
    %435 = vmatprep.subr.mxu0 0.0
    %436 = vmatpush1.msra.mxu0 %v409
    %437 = vmatprep.subr.mxu0 0.0
    %438 = vmatpush1.msra.mxu0 %v410
    %439 = vmatprep.subr.mxu0 0.0
    %440 = vmatpush1.msra.mxu0 %v411
    %441 = vmatprep.subr.mxu0 0.0
    %442 = vmatpush1.msra.mxu0 %v412
    %443 = vmatprep.subr.mxu0 0.0
    %444 = vmatpush1.msra.mxu0 %v413
    %445 = vmatprep.subr.mxu0 0.0
    %446 = vmatpush1.msra.mxu0 %v414
    %447 = vmatprep.subr.mxu0 0.0
    %448 = vmatpush1.msra.mxu0 0.0
    %449 = vmatprep.subr.mxu0 0.0
    %450 = vmatpush1.msra.mxu0 0.0
    %451 = vmatprep.subr.mxu0 0.0
    %452 = vmatpush1.msra.mxu0 0.0
    %453 = vmatprep.subr.mxu0 0.0
    %454 = vmatpush1.msra.mxu0 0.0
    %455 = vmatprep.subr.mxu0 0.0
    %456 = vmatpush1.msra.mxu0 0.0
    %457 = vmatprep.subr.mxu0 0.0
    %458 = vmatpush1.msra.mxu0 0.0
    %459 = vmatprep.subr.mxu0 0.0
    %460 = vmatpush1.msra.mxu0 0.0
    %461 = vmatprep.subr.mxu0 0.0
    %462 = vmatpush1.msra.mxu0 0.0
    %463 = vmatprep.subr.mxu0 0.0
    %464 = vmatpush1.msra.mxu0 0.0
    %465 = vmatprep.subr.mxu0 0.0
    %466 = vmatpush1.msra.mxu0 0.0
    %467 = vmatprep.subr.mxu0 0.0
    %468 = vmatpush1.msra.mxu0 0.0
    %469 = vmatprep.subr.mxu0 0.0
    %470 = vmatpush1.msra.mxu0 0.0
    %471 = vmatprep.subr.mxu0 0.0
    %472 = vmatpush1.msra.mxu0 0.0
    %473 = vmatprep.subr.mxu0 0.0
    %474 = vmatpush1.msra.mxu0 0.0
    %475 = vmatprep.subr.mxu0 0.0
    %476 = vmatpush1.msra.mxu0 0.0
    %477 = vmatprep.subr.mxu0 0.0
    %478 = vmatpush1.msra.mxu0 0.0
    %479 = vmatprep.mubr.f32.mxu0 0.0
    %480 = vmatmul.mubr.f32.gmra.mrb[0].mxu0 %v287
    %v481 = vpop.f32.mrb[0].mxu0
    %v482 = vadd.f32 0.0, %v481
    %v483 = vpop.f32.mrb[0].mxu0
    %484 = vmatprep.mubr.f32.mxu0 0.0
    %485 = vmatmul.mubr.f32.gmra.mrb[0].mxu0 %v288
    %v486 = vpop.f32.mrb[0].mxu0
    %v487 = vadd.f32 0.0, %v486
    %v488 = vpop.f32.mrb[0].mxu0
    %489 = vdwg.mxu0
    %v492 = vunpack.c.l.s4 1966171168
    %v493 = vunpack.c.0.s8 %v492
    %v494 = vlaneseq
    %v495 = vshrl.u32 %v494, 7
    %v496 = vsub.s32 %v493, %v495
    %v497 = vrot.slane %v396, %v496
    %v498 = vcombine.high %v497, %v497
    %v500 = vunpack.c.l.s4 1966171168
    %v501 = vunpack.c.0.s8 %v500
    %v502 = vlaneseq
    %v503 = vshrl.u32 %v502, 7
    %v504 = vsub.s32 %v501, %v503
    %v505 = vrot.slane %v497, %v504
    %v507 = vunpack.c.l.s4 1966171168
    %v508 = vunpack.c.0.s8 %v507
    %v509 = vlaneseq
    %v510 = vshrl.u32 %v509, 7
    %v511 = vsub.s32 %v508, %v510
    %v512 = vrot.slane %v498, %v511
    %v513 = vlaneseq
    %v514 = vshrl.u32 %v513, 7
    %v515 = vsub.s32 0, %v514
    %v516 = vrot.slane %v505, %v515
    %v517 = vlaneseq
    %v518 = vshrl.u32 %v517, 7
    %v519 = vsub.s32 0, %v518
    %v520 = vrot.slane %v512, %v519
    %v523 = vadd.f32 %v482, %v516
    %v524 = vadd.f32 %v487, %v520
    %v525 = vmax.f32 %v523, 0.0
    %v526 = vmax.f32 %v524, 0.0
    %v527 = vld [vmem:[#allocation8] sm:$0xff]
    %v528 = vld [vmem:[#allocation8 + $0x8] sm:$0xff]
    %v529 = vld [vmem:[#allocation8 + $0x10] sm:$0xff]
    %v530 = vld [vmem:[#allocation8 + $0x18] sm:$0xff]
    %v531 = vld [vmem:[#allocation8 + $0x20] sm:$0xff]
    %v532 = vld [vmem:[#allocation8 + $0x28] sm:$0xff]
    %v533 = vld [vmem:[#allocation8 + $0x30] sm:$0xff]
    %v534 = vld [vmem:[#allocation8 + $0x38] sm:$0xff]
    %v535 = vld [vmem:[#allocation8 + $0x40] sm:$0xff]
    %v536 = vld [vmem:[#allocation8 + $0x48] sm:$0xff]
    %v537 = vld [vmem:[#allocation8 + $0x50] sm:$0xff]
    %v538 = vld [vmem:[#allocation8 + $0x58] sm:$0xff]
    %v539 = vld [vmem:[#allocation8 + $0x60] sm:$0xff]
    %v540 = vld [vmem:[#allocation8 + $0x68] sm:$0xff]
    %v541 = vld [vmem:[#allocation8 + $0x70] sm:$0xff]
    %v542 = vld [vmem:[#allocation8 + $0x78] sm:$0xff]
    %s543 = scalar_lea.vmem [#allocation2], 128
    %v544 = vld [vmem:[%s543] sm:$0xff]
    %v545 = vld [vmem:[%s543 + $0x8] sm:$0xff]
    %v546 = vld [vmem:[%s543 + $0x10] sm:$0xff]
    %v547 = vld [vmem:[%s543 + $0x18] sm:$0xff]
    %v548 = vld [vmem:[%s543 + $0x20] sm:$0xff]
    %v549 = vld [vmem:[%s543 + $0x28] sm:$0xff]
    %v550 = vld [vmem:[%s543 + $0x30] sm:$0xff]
    %v551 = vld [vmem:[%s543 + $0x38] sm:$0xff]
    %v552 = vld [vmem:[%s543 + $0x40] sm:$0xff]
    %v553 = vld [vmem:[%s543 + $0x48] sm:$0xff]
    %v554 = vld [vmem:[%s543 + $0x50] sm:$0xff]
    %v555 = vld [vmem:[%s543 + $0x58] sm:$0xff]
    %v556 = vld [vmem:[%s543 + $0x60] sm:$0xff]
    %v557 = vld [vmem:[%s543 + $0x68] sm:$0xff]
    %v558 = vld [vmem:[%s543 + $0x70] sm:$0xff]
    %v559 = vld [vmem:[%s543 + $0x78] sm:$0xff]
    %s560 = scalar_lea.vmem %s4, 1
    %v561 = vld [vmem:[%s560] sm:$0x1]
    %v563 = vlaneseq
    %v564 = vshrl.u32 %v563, 7
    %v565 = vsub.s32 0, %v564
    %v566 = vrot.slane %v561, %v565
    %568 = vmatprep.subr.mxu0 0.0
    %569 = vmatpush1.msra.mxu0 %v544
    %570 = vmatprep.subr.mxu0 0.0
    %571 = vmatpush1.msra.mxu0 %v545
    %572 = vmatprep.subr.mxu0 0.0
    %573 = vmatpush1.msra.mxu0 %v546
    %574 = vmatprep.subr.mxu0 0.0
    %575 = vmatpush1.msra.mxu0 %v547
    %576 = vmatprep.subr.mxu0 0.0
    %577 = vmatpush1.msra.mxu0 %v548
    %578 = vmatprep.subr.mxu0 0.0
    %579 = vmatpush1.msra.mxu0 %v549
    %580 = vmatprep.subr.mxu0 0.0
    %581 = vmatpush1.msra.mxu0 %v550
    %582 = vmatprep.subr.mxu0 0.0
    %583 = vmatpush1.msra.mxu0 %v551
    %584 = vmatprep.subr.mxu0 0.0
    %585 = vmatpush1.msra.mxu0 %v552
    %586 = vmatprep.subr.mxu0 0.0
    %587 = vmatpush1.msra.mxu0 %v553
    %588 = vmatprep.subr.mxu0 0.0
    %589 = vmatpush1.msra.mxu0 %v554
    %590 = vmatprep.subr.mxu0 0.0
    %591 = vmatpush1.msra.mxu0 %v555
    %592 = vmatprep.subr.mxu0 0.0
    %593 = vmatpush1.msra.mxu0 %v556
    %594 = vmatprep.subr.mxu0 0.0
    %595 = vmatpush1.msra.mxu0 %v557
    %596 = vmatprep.subr.mxu0 0.0
    %597 = vmatpush1.msra.mxu0 %v558
    %598 = vmatprep.subr.mxu0 0.0
    %599 = vmatpush1.msra.mxu0 %v559
    %600 = vmatprep.subr.mxu0 0.0
    %601 = vmatpush1.msra.mxu0 0.0
    %602 = vmatprep.subr.mxu0 0.0
    %603 = vmatpush1.msra.mxu0 0.0
    %604 = vmatprep.subr.mxu0 0.0
    %605 = vmatpush1.msra.mxu0 0.0
    %606 = vmatprep.subr.mxu0 0.0
    %607 = vmatpush1.msra.mxu0 0.0
    %608 = vmatprep.subr.mxu0 0.0
    %609 = vmatpush1.msra.mxu0 0.0
    %610 = vmatprep.subr.mxu0 0.0
    %611 = vmatpush1.msra.mxu0 0.0
    %612 = vmatprep.subr.mxu0 0.0
    %613 = vmatpush1.msra.mxu0 0.0
    %614 = vmatprep.subr.mxu0 0.0
    %615 = vmatpush1.msra.mxu0 0.0
    %616 = vmatprep.subr.mxu0 0.0
    %617 = vmatpush1.msra.mxu0 0.0
    %618 = vmatprep.subr.mxu0 0.0
    %619 = vmatpush1.msra.mxu0 0.0
    %620 = vmatprep.subr.mxu0 0.0
    %621 = vmatpush1.msra.mxu0 0.0
    %622 = vmatprep.subr.mxu0 0.0
    %623 = vmatpush1.msra.mxu0 0.0
    %624 = vmatprep.subr.mxu0 0.0
    %625 = vmatpush1.msra.mxu0 0.0
    %626 = vmatprep.subr.mxu0 0.0
    %627 = vmatpush1.msra.mxu0 0.0
    %628 = vmatprep.subr.mxu0 0.0
    %629 = vmatpush1.msra.mxu0 0.0
    %630 = vmatprep.subr.mxu0 0.0
    %631 = vmatpush1.msra.mxu0 0.0
    %632 = vmatprep.mubr.f32.mxu0 0.0
    %633 = vmatmul.mubr.f32.gmra.mrb[0].mxu0 %v525
    %v634 = vpop.f32.mrb[0].mxu0
    %v635 = vadd.f32 %v566, %v634
    %v636 = vpop.f32.mrb[0].mxu0
    %637 = vmatprep.mubr.f32.mxu0 0.0
    %638 = vmatmul.mubr.f32.gmra.mrb[0].mxu0 %v526
    %v639 = vpop.f32.mrb[0].mxu0
    %v640 = vadd.f32 %v566, %v639
    %v641 = vpop.f32.mrb[0].mxu0
    %642 = vdwg.mxu0
    %v643 = vmax.f32 %v635, 0.0
    %v644 = vmax.f32 %v640, 0.0
    %v645 = vrot.slane %v643, 4
    %v646 = vmax.f32 %v643, %v645
    %v647 = vrot.slane %v646, 2
    %v648 = vmax.f32 %v646, %v647
    %v649 = vrot.slane %v648, 1
    %v650 = vmax.f32 %v648, %v649
    %v651 = vrot.slane %v644, 4
    %v652 = vmax.f32 %v644, %v651
    %v653 = vrot.slane %v652, 2
    %v654 = vmax.f32 %v652, %v653
    %v655 = vrot.slane %v654, 1
    %v656 = vmax.f32 %v654, %v655
    %s657 = scalar_lea.vmem [#allocation7], 128
    %v658 = vld [vmem:[%s657] sm:$0xff]
    %v659 = vld [vmem:[%s657 + $0x8] sm:$0xff]
    %v660 = vld [vmem:[%s657 + $0x10] sm:$0xff]
    %v661 = vld [vmem:[%s657 + $0x18] sm:$0xff]
    %v662 = vld [vmem:[%s657 + $0x20] sm:$0xff]
    %v663 = vld [vmem:[%s657 + $0x28] sm:$0xff]
    %v664 = vld [vmem:[%s657 + $0x30] sm:$0xff]
    %v665 = vld [vmem:[%s657 + $0x38] sm:$0xff]
    %v666 = vld [vmem:[%s657 + $0x40] sm:$0xff]
    %v667 = vld [vmem:[%s657 + $0x48] sm:$0xff]
    %v668 = vld [vmem:[%s657 + $0x50] sm:$0xff]
    %v669 = vld [vmem:[%s657 + $0x58] sm:$0xff]
    %v670 = vld [vmem:[%s657 + $0x60] sm:$0xff]
    %v671 = vld [vmem:[%s657 + $0x68] sm:$0xff]
    %v672 = vld [vmem:[%s657 + $0x70] sm:$0xff]
    %v673 = vld [vmem:[%s657 + $0x78] sm:$0xff]
    %s674 = scalar_lea.vmem %s7, 1
    %v675 = vld [vmem:[%s674] sm:$0x1]
    %v677 = vlaneseq
    %v678 = vshrl.u32 %v677, 7
    %v679 = vsub.s32 0, %v678
    %v680 = vrot.slane %v675, %v679
    %v684 = vsel %vm326, %v656, %v650
    %686 = vmatprep.subr.mxu0 0.0
    %687 = vmatpush1.msra.mxu0 %v658
    %688 = vmatprep.subr.mxu0 0.0
    %689 = vmatpush1.msra.mxu0 %v659
    %690 = vmatprep.subr.mxu0 0.0
    %691 = vmatpush1.msra.mxu0 %v660
    %692 = vmatprep.subr.mxu0 0.0
    %693 = vmatpush1.msra.mxu0 %v661
    %694 = vmatprep.subr.mxu0 0.0
    %695 = vmatpush1.msra.mxu0 %v662
    %696 = vmatprep.subr.mxu0 0.0
    %697 = vmatpush1.msra.mxu0 %v663
    %698 = vmatprep.subr.mxu0 0.0
    %699 = vmatpush1.msra.mxu0 %v664
    %700 = vmatprep.subr.mxu0 0.0
    %701 = vmatpush1.msra.mxu0 %v665
    %702 = vmatprep.subr.mxu0 0.0
    %703 = vmatpush1.msra.mxu0 %v666
    %704 = vmatprep.subr.mxu0 0.0
    %705 = vmatpush1.msra.mxu0 %v667
    %706 = vmatprep.subr.mxu0 0.0
    %707 = vmatpush1.msra.mxu0 %v668
    %708 = vmatprep.subr.mxu0 0.0
    %709 = vmatpush1.msra.mxu0 %v669
    %710 = vmatprep.subr.mxu0 0.0
    %711 = vmatpush1.msra.mxu0 %v670
    %712 = vmatprep.subr.mxu0 0.0
    %713 = vmatpush1.msra.mxu0 %v671
    %714 = vmatprep.subr.mxu0 0.0
    %715 = vmatpush1.msra.mxu0 %v672
    %716 = vmatprep.subr.mxu0 0.0
    %717 = vmatpush1.msra.mxu0 %v673
    %718 = vmatprep.subr.mxu0 0.0
    %719 = vmatpush1.msra.mxu0 0.0
    %720 = vmatprep.subr.mxu0 0.0
    %721 = vmatpush1.msra.mxu0 0.0
    %722 = vmatprep.subr.mxu0 0.0
    %723 = vmatpush1.msra.mxu0 0.0
    %724 = vmatprep.subr.mxu0 0.0
    %725 = vmatpush1.msra.mxu0 0.0
    %726 = vmatprep.subr.mxu0 0.0
    %727 = vmatpush1.msra.mxu0 0.0
    %728 = vmatprep.subr.mxu0 0.0
    %729 = vmatpush1.msra.mxu0 0.0
    %730 = vmatprep.subr.mxu0 0.0
    %731 = vmatpush1.msra.mxu0 0.0
    %732 = vmatprep.subr.mxu0 0.0
    %733 = vmatpush1.msra.mxu0 0.0
    %734 = vmatprep.subr.mxu0 0.0
    %735 = vmatpush1.msra.mxu0 0.0
    %736 = vmatprep.subr.mxu0 0.0
    %737 = vmatpush1.msra.mxu0 0.0
    %738 = vmatprep.subr.mxu0 0.0
    %739 = vmatpush1.msra.mxu0 0.0
    %740 = vmatprep.subr.mxu0 0.0
    %741 = vmatpush1.msra.mxu0 0.0
    %742 = vmatprep.subr.mxu0 0.0
    %743 = vmatpush1.msra.mxu0 0.0
    %744 = vmatprep.subr.mxu0 0.0
    %745 = vmatpush1.msra.mxu0 0.0
    %746 = vmatprep.subr.mxu0 0.0
    %747 = vmatpush1.msra.mxu0 0.0
    %748 = vmatprep.subr.mxu0 0.0
    %749 = vmatpush1.msra.mxu0 0.0
    %750 = vmatprep.mubr.f32.mxu0 0.0
    %751 = vmatmul.mubr.f32.gmra.mrb[0].mxu0 %v684
    %v752 = vpop.f32.mrb[0].mxu0
    %v753 = vadd.f32 %v680, %v752
    %v754 = vpop.f32.mrb[0].mxu0
    %755 = vdwg.mxu0
    %s756 = scalar_lea.vmem [#allocation5], 128
    %v757 = vld [vmem:[%s756] sm:$0xff]
    %v758 = vld [vmem:[%s756 + $0x8] sm:$0xff]
    %v759 = vld [vmem:[%s756 + $0x10] sm:$0xff]
    %v760 = vld [vmem:[%s756 + $0x18] sm:$0xff]
    %v761 = vld [vmem:[%s756 + $0x20] sm:$0xff]
    %v762 = vld [vmem:[%s756 + $0x28] sm:$0xff]
    %v763 = vld [vmem:[%s756 + $0x30] sm:$0xff]
    %v764 = vld [vmem:[%s756 + $0x38] sm:$0xff]
    %v765 = vld [vmem:[%s756 + $0x40] sm:$0xff]
    %v766 = vld [vmem:[%s756 + $0x48] sm:$0xff]
    %v767 = vld [vmem:[%s756 + $0x50] sm:$0xff]
    %v768 = vld [vmem:[%s756 + $0x58] sm:$0xff]
    %v769 = vld [vmem:[%s756 + $0x60] sm:$0xff]
    %v770 = vld [vmem:[%s756 + $0x68] sm:$0xff]
    %v771 = vld [vmem:[%s756 + $0x70] sm:$0xff]
    %v772 = vld [vmem:[%s756 + $0x78] sm:$0xff]
    %773 = vmatprep.subr.mxu0 0.0
    %774 = vmatpush1.msra.mxu0 %v757
    %775 = vmatprep.subr.mxu0 0.0
    %776 = vmatpush1.msra.mxu0 %v758
    %777 = vmatprep.subr.mxu0 0.0
    %778 = vmatpush1.msra.mxu0 %v759
    %779 = vmatprep.subr.mxu0 0.0
    %780 = vmatpush1.msra.mxu0 %v760
    %781 = vmatprep.subr.mxu0 0.0
    %782 = vmatpush1.msra.mxu0 %v761
    %783 = vmatprep.subr.mxu0 0.0
    %784 = vmatpush1.msra.mxu0 %v762
    %785 = vmatprep.subr.mxu0 0.0
    %786 = vmatpush1.msra.mxu0 %v763
    %787 = vmatprep.subr.mxu0 0.0
    %788 = vmatpush1.msra.mxu0 %v764
    %789 = vmatprep.subr.mxu0 0.0
    %790 = vmatpush1.msra.mxu0 %v765
    %791 = vmatprep.subr.mxu0 0.0
    %792 = vmatpush1.msra.mxu0 %v766
    %793 = vmatprep.subr.mxu0 0.0
    %794 = vmatpush1.msra.mxu0 %v767
    %795 = vmatprep.subr.mxu0 0.0
    %796 = vmatpush1.msra.mxu0 %v768
    %797 = vmatprep.subr.mxu0 0.0
    %798 = vmatpush1.msra.mxu0 %v769
    %799 = vmatprep.subr.mxu0 0.0
    %800 = vmatpush1.msra.mxu0 %v770
    %801 = vmatprep.subr.mxu0 0.0
    %802 = vmatpush1.msra.mxu0 %v771
    %803 = vmatprep.subr.mxu0 0.0
    %804 = vmatpush1.msra.mxu0 %v772
    %805 = vmatprep.subr.mxu0 0.0
    %806 = vmatpush1.msra.mxu0 0.0
    %807 = vmatprep.subr.mxu0 0.0
    %808 = vmatpush1.msra.mxu0 0.0
    %809 = vmatprep.subr.mxu0 0.0
    %810 = vmatpush1.msra.mxu0 0.0
    %811 = vmatprep.subr.mxu0 0.0
    %812 = vmatpush1.msra.mxu0 0.0
    %813 = vmatprep.subr.mxu0 0.0
    %814 = vmatpush1.msra.mxu0 0.0
    %815 = vmatprep.subr.mxu0 0.0
    %816 = vmatpush1.msra.mxu0 0.0
    %817 = vmatprep.subr.mxu0 0.0
    %818 = vmatpush1.msra.mxu0 0.0
    %819 = vmatprep.subr.mxu0 0.0
    %820 = vmatpush1.msra.mxu0 0.0
    %821 = vmatprep.subr.mxu0 0.0
    %822 = vmatpush1.msra.mxu0 0.0
    %823 = vmatprep.subr.mxu0 0.0
    %824 = vmatpush1.msra.mxu0 0.0
    %825 = vmatprep.subr.mxu0 0.0
    %826 = vmatpush1.msra.mxu0 0.0
    %827 = vmatprep.subr.mxu0 0.0
    %828 = vmatpush1.msra.mxu0 0.0
    %829 = vmatprep.subr.mxu0 0.0
    %830 = vmatpush1.msra.mxu0 0.0
    %831 = vmatprep.subr.mxu0 0.0
    %832 = vmatpush1.msra.mxu0 0.0
    %833 = vmatprep.subr.mxu0 0.0
    %834 = vmatpush1.msra.mxu0 0.0
    %835 = vmatprep.subr.mxu0 0.0
    %836 = vmatpush1.msra.mxu0 0.0
    %837 = vmatprep.mubr.f32.mxu0 0.0
    %838 = vmatmul.mubr.f32.gmra.mrb[0].mxu0 %v643
    %v839 = vpop.f32.mrb[0].mxu0
    %v840 = vadd.f32 0.0, %v839
    %v841 = vpop.f32.mrb[0].mxu0
    %842 = vmatprep.mubr.f32.mxu0 0.0
    %843 = vmatmul.mubr.f32.gmra.mrb[0].mxu0 %v644
    %v844 = vpop.f32.mrb[0].mxu0
    %v845 = vadd.f32 0.0, %v844
    %v846 = vpop.f32.mrb[0].mxu0
    %847 = vdwg.mxu0
    %v850 = vunpack.c.l.s4 1966171168
    %v851 = vunpack.c.0.s8 %v850
    %v852 = vlaneseq
    %v853 = vshrl.u32 %v852, 7
    %v854 = vsub.s32 %v851, %v853
    %v855 = vrot.slane %v753, %v854
    %v856 = vcombine.high %v855, %v855
    %v858 = vunpack.c.l.s4 1966171168
    %v859 = vunpack.c.0.s8 %v858
    %v860 = vlaneseq
    %v861 = vshrl.u32 %v860, 7
    %v862 = vsub.s32 %v859, %v861
    %v863 = vrot.slane %v855, %v862
    %v865 = vunpack.c.l.s4 1966171168
    %v866 = vunpack.c.0.s8 %v865
    %v867 = vlaneseq
    %v868 = vshrl.u32 %v867, 7
    %v869 = vsub.s32 %v866, %v868
    %v870 = vrot.slane %v856, %v869
    %v871 = vlaneseq
    %v872 = vshrl.u32 %v871, 7
    %v873 = vsub.s32 0, %v872
    %v874 = vrot.slane %v863, %v873
    %v875 = vlaneseq
    %v876 = vshrl.u32 %v875, 7
    %v877 = vsub.s32 0, %v876
    %v878 = vrot.slane %v870, %v877
    %v881 = vadd.f32 %v840, %v874
    %v882 = vadd.f32 %v845, %v878
    %v883 = vmax.f32 %v881, 0.0
    %v884 = vmax.f32 %v882, 0.0
    %s885 = scalar_lea.vmem [#allocation8], 128
    %v886 = vld [vmem:[%s885] sm:$0xff]
    %v887 = vld [vmem:[%s885 + $0x8] sm:$0xff]
    %v888 = vld [vmem:[%s885 + $0x10] sm:$0xff]
    %v889 = vld [vmem:[%s885 + $0x18] sm:$0xff]
    %v890 = vld [vmem:[%s885 + $0x20] sm:$0xff]
    %v891 = vld [vmem:[%s885 + $0x28] sm:$0xff]
    %v892 = vld [vmem:[%s885 + $0x30] sm:$0xff]
    %v893 = vld [vmem:[%s885 + $0x38] sm:$0xff]
    %v894 = vld [vmem:[%s885 + $0x40] sm:$0xff]
    %v895 = vld [vmem:[%s885 + $0x48] sm:$0xff]
    %v896 = vld [vmem:[%s885 + $0x50] sm:$0xff]
    %v897 = vld [vmem:[%s885 + $0x58] sm:$0xff]
    %v898 = vld [vmem:[%s885 + $0x60] sm:$0xff]
    %v899 = vld [vmem:[%s885 + $0x68] sm:$0xff]
    %v900 = vld [vmem:[%s885 + $0x70] sm:$0xff]
    %v901 = vld [vmem:[%s885 + $0x78] sm:$0xff]
    %902 = vmatprep.subr.mxu0 0.0
    %903 = vmatpush1.msra.mxu0 %v886
    %904 = vmatprep.subr.mxu0 0.0
    %905 = vmatpush1.msra.mxu0 %v887
    %906 = vmatprep.subr.mxu0 0.0
    %907 = vmatpush1.msra.mxu0 %v888
    %908 = vmatprep.subr.mxu0 0.0
    %909 = vmatpush1.msra.mxu0 %v889
    %910 = vmatprep.subr.mxu0 0.0
    %911 = vmatpush1.msra.mxu0 %v890
    %912 = vmatprep.subr.mxu0 0.0
    %913 = vmatpush1.msra.mxu0 %v891
    %914 = vmatprep.subr.mxu0 0.0
    %915 = vmatpush1.msra.mxu0 %v892
    %916 = vmatprep.subr.mxu0 0.0
    %917 = vmatpush1.msra.mxu0 %v893
    %918 = vmatprep.subr.mxu0 0.0
    %919 = vmatpush1.msra.mxu0 %v894
    %920 = vmatprep.subr.mxu0 0.0
    %921 = vmatpush1.msra.mxu0 %v895
    %922 = vmatprep.subr.mxu0 0.0
    %923 = vmatpush1.msra.mxu0 %v896
    %924 = vmatprep.subr.mxu0 0.0
    %925 = vmatpush1.msra.mxu0 %v897
    %926 = vmatprep.subr.mxu0 0.0
    %927 = vmatpush1.msra.mxu0 %v898
    %928 = vmatprep.subr.mxu0 0.0
    %929 = vmatpush1.msra.mxu0 %v899
    %930 = vmatprep.subr.mxu0 0.0
    %931 = vmatpush1.msra.mxu0 %v900
    %932 = vmatprep.subr.mxu0 0.0
    %933 = vmatpush1.msra.mxu0 %v901
    %934 = vmatprep.subr.mxu0 0.0
    %935 = vmatpush1.msra.mxu0 0.0
    %936 = vmatprep.subr.mxu0 0.0
    %937 = vmatpush1.msra.mxu0 0.0
    %938 = vmatprep.subr.mxu0 0.0
    %939 = vmatpush1.msra.mxu0 0.0
    %940 = vmatprep.subr.mxu0 0.0
    %941 = vmatpush1.msra.mxu0 0.0
    %942 = vmatprep.subr.mxu0 0.0
    %943 = vmatpush1.msra.mxu0 0.0
    %944 = vmatprep.subr.mxu0 0.0
    %945 = vmatpush1.msra.mxu0 0.0
    %946 = vmatprep.subr.mxu0 0.0
    %947 = vmatpush1.msra.mxu0 0.0
    %948 = vmatprep.subr.mxu0 0.0
    %949 = vmatpush1.msra.mxu0 0.0
    %950 = vmatprep.subr.mxu0 0.0
    %951 = vmatpush1.msra.mxu0 0.0
    %952 = vmatprep.subr.mxu0 0.0
    %953 = vmatpush1.msra.mxu0 0.0
    %954 = vmatprep.subr.mxu0 0.0
    %955 = vmatpush1.msra.mxu0 0.0
    %956 = vmatprep.subr.mxu0 0.0
    %957 = vmatpush1.msra.mxu0 0.0
    %958 = vmatprep.subr.mxu0 0.0
    %959 = vmatpush1.msra.mxu0 0.0
    %960 = vmatprep.subr.mxu0 0.0
    %961 = vmatpush1.msra.mxu0 0.0
    %962 = vmatprep.subr.mxu0 0.0
    %963 = vmatpush1.msra.mxu0 0.0
    %964 = vmatprep.subr.mxu0 0.0
    %965 = vmatpush1.msra.mxu0 0.0
    %966 = vmatprep.mubr.f32.mxu0 0.0
    %967 = vmatmul.mubr.f32.gmra.mrb[0].mxu0 %v883
    %v968 = vpop.f32.mrb[0].mxu0
    %v969 = vadd.f32 0.0, %v968
    %v970 = vpop.f32.mrb[0].mxu0
    %971 = vmatprep.mubr.f32.mxu0 0.0
    %972 = vmatmul.mubr.f32.gmra.mrb[0].mxu0 %v884
    %v973 = vpop.f32.mrb[0].mxu0
    %v974 = vadd.f32 0.0, %v973
    %v975 = vpop.f32.mrb[0].mxu0
    %976 = vdwg.mxu0
    %977 = vmatprep.subr.mxu0 0.0
    %978 = vmatpush1.msra.mxu0 %v527
    %979 = vmatprep.subr.mxu0 0.0
    %980 = vmatpush1.msra.mxu0 %v528
    %981 = vmatprep.subr.mxu0 0.0
    %982 = vmatpush1.msra.mxu0 %v529
    %983 = vmatprep.subr.mxu0 0.0
    %984 = vmatpush1.msra.mxu0 %v530
    %985 = vmatprep.subr.mxu0 0.0
    %986 = vmatpush1.msra.mxu0 %v531
    %987 = vmatprep.subr.mxu0 0.0
    %988 = vmatpush1.msra.mxu0 %v532
    %989 = vmatprep.subr.mxu0 0.0
    %990 = vmatpush1.msra.mxu0 %v533
    %991 = vmatprep.subr.mxu0 0.0
    %992 = vmatpush1.msra.mxu0 %v534
    %993 = vmatprep.subr.mxu0 0.0
    %994 = vmatpush1.msra.mxu0 %v535
    %995 = vmatprep.subr.mxu0 0.0
    %996 = vmatpush1.msra.mxu0 %v536
    %997 = vmatprep.subr.mxu0 0.0
    %998 = vmatpush1.msra.mxu0 %v537
    %999 = vmatprep.subr.mxu0 0.0
    %1000 = vmatpush1.msra.mxu0 %v538
    %1001 = vmatprep.subr.mxu0 0.0
    %1002 = vmatpush1.msra.mxu0 %v539
    %1003 = vmatprep.subr.mxu0 0.0
    %1004 = vmatpush1.msra.mxu0 %v540
    %1005 = vmatprep.subr.mxu0 0.0
    %1006 = vmatpush1.msra.mxu0 %v541
    %1007 = vmatprep.subr.mxu0 0.0
    %1008 = vmatpush1.msra.mxu0 %v542
    %1009 = vmatprep.subr.mxu0 0.0
    %1010 = vmatpush1.msra.mxu0 0.0
    %1011 = vmatprep.subr.mxu0 0.0
    %1012 = vmatpush1.msra.mxu0 0.0
    %1013 = vmatprep.subr.mxu0 0.0
    %1014 = vmatpush1.msra.mxu0 0.0
    %1015 = vmatprep.subr.mxu0 0.0
    %1016 = vmatpush1.msra.mxu0 0.0
    %1017 = vmatprep.subr.mxu0 0.0
    %1018 = vmatpush1.msra.mxu0 0.0
    %1019 = vmatprep.subr.mxu0 0.0
    %1020 = vmatpush1.msra.mxu0 0.0
    %1021 = vmatprep.subr.mxu0 0.0
    %1022 = vmatpush1.msra.mxu0 0.0
    %1023 = vmatprep.subr.mxu0 0.0
    %1024 = vmatpush1.msra.mxu0 0.0
    %1025 = vmatprep.subr.mxu0 0.0
    %1026 = vmatpush1.msra.mxu0 0.0
    %1027 = vmatprep.subr.mxu0 0.0
    %1028 = vmatpush1.msra.mxu0 0.0
    %1029 = vmatprep.subr.mxu0 0.0
    %1030 = vmatpush1.msra.mxu0 0.0
    %1031 = vmatprep.subr.mxu0 0.0
    %1032 = vmatpush1.msra.mxu0 0.0
    %1033 = vmatprep.subr.mxu0 0.0
    %1034 = vmatpush1.msra.mxu0 0.0
    %1035 = vmatprep.subr.mxu0 0.0
    %1036 = vmatpush1.msra.mxu0 0.0
    %1037 = vmatprep.subr.mxu0 0.0
    %1038 = vmatpush1.msra.mxu0 0.0
    %1039 = vmatprep.subr.mxu0 0.0
    %1040 = vmatpush1.msra.mxu0 0.0
    %1041 = vmatprep.mubr.f32.mxu0 0.0
    %1042 = vmatmul.mubr.f32.gmra.mrb[0].mxu0 %v525
    %v1043 = vpop.f32.mrb[0].mxu0
    %v1044 = vadd.f32 %v969, %v1043
    %v1045 = vpop.f32.mrb[0].mxu0
    %1046 = vmatprep.mubr.f32.mxu0 0.0
    %1047 = vmatmul.mubr.f32.gmra.mrb[0].mxu0 %v526
    %v1048 = vpop.f32.mrb[0].mxu0
    %v1049 = vadd.f32 %v974, %v1048
    %v1050 = vpop.f32.mrb[0].mxu0
    %1051 = vdwg.mxu0
    %s1052 = scalar_lea.vmem [#allocation2], 256
    %v1053 = vld [vmem:[%s1052] sm:$0xff]
    %v1054 = vld [vmem:[%s1052 + $0x8] sm:$0xff]
    %v1055 = vld [vmem:[%s1052 + $0x10] sm:$0xff]
    %v1056 = vld [vmem:[%s1052 + $0x18] sm:$0xff]
    %v1057 = vld [vmem:[%s1052 + $0x20] sm:$0xff]
    %v1058 = vld [vmem:[%s1052 + $0x28] sm:$0xff]
    %v1059 = vld [vmem:[%s1052 + $0x30] sm:$0xff]
    %v1060 = vld [vmem:[%s1052 + $0x38] sm:$0xff]
    %v1061 = vld [vmem:[%s1052 + $0x40] sm:$0xff]
    %v1062 = vld [vmem:[%s1052 + $0x48] sm:$0xff]
    %v1063 = vld [vmem:[%s1052 + $0x50] sm:$0xff]
    %v1064 = vld [vmem:[%s1052 + $0x58] sm:$0xff]
    %v1065 = vld [vmem:[%s1052 + $0x60] sm:$0xff]
    %v1066 = vld [vmem:[%s1052 + $0x68] sm:$0xff]
    %v1067 = vld [vmem:[%s1052 + $0x70] sm:$0xff]
    %v1068 = vld [vmem:[%s1052 + $0x78] sm:$0xff]
    %s1069 = scalar_lea.vmem %s4, 2
    %v1070 = vld [vmem:[%s1069] sm:$0x1]
    %v1072 = vlaneseq
    %v1073 = vshrl.u32 %v1072, 7
    %v1074 = vsub.s32 0, %v1073
    %v1075 = vrot.slane %v1070, %v1074
    %1077 = vmatprep.subr.mxu0 0.0
    %1078 = vmatpush1.msra.mxu0 %v1053
    %1079 = vmatprep.subr.mxu0 0.0
    %1080 = vmatpush1.msra.mxu0 %v1054
    %1081 = vmatprep.subr.mxu0 0.0
    %1082 = vmatpush1.msra.mxu0 %v1055
    %1083 = vmatprep.subr.mxu0 0.0
    %1084 = vmatpush1.msra.mxu0 %v1056
    %1085 = vmatprep.subr.mxu0 0.0
    %1086 = vmatpush1.msra.mxu0 %v1057
    %1087 = vmatprep.subr.mxu0 0.0
    %1088 = vmatpush1.msra.mxu0 %v1058
    %1089 = vmatprep.subr.mxu0 0.0
    %1090 = vmatpush1.msra.mxu0 %v1059
    %1091 = vmatprep.subr.mxu0 0.0
    %1092 = vmatpush1.msra.mxu0 %v1060
    %1093 = vmatprep.subr.mxu0 0.0
    %1094 = vmatpush1.msra.mxu0 %v1061
    %1095 = vmatprep.subr.mxu0 0.0
    %1096 = vmatpush1.msra.mxu0 %v1062
    %1097 = vmatprep.subr.mxu0 0.0
    %1098 = vmatpush1.msra.mxu0 %v1063
    %1099 = vmatprep.subr.mxu0 0.0
    %1100 = vmatpush1.msra.mxu0 %v1064
    %1101 = vmatprep.subr.mxu0 0.0
    %1102 = vmatpush1.msra.mxu0 %v1065
    %1103 = vmatprep.subr.mxu0 0.0
    %1104 = vmatpush1.msra.mxu0 %v1066
    %1105 = vmatprep.subr.mxu0 0.0
    %1106 = vmatpush1.msra.mxu0 %v1067
    %1107 = vmatprep.subr.mxu0 0.0
    %1108 = vmatpush1.msra.mxu0 %v1068
    %1109 = vmatprep.subr.mxu0 0.0
    %1110 = vmatpush1.msra.mxu0 0.0
    %1111 = vmatprep.subr.mxu0 0.0
    %1112 = vmatpush1.msra.mxu0 0.0
    %1113 = vmatprep.subr.mxu0 0.0
    %1114 = vmatpush1.msra.mxu0 0.0
    %1115 = vmatprep.subr.mxu0 0.0
    %1116 = vmatpush1.msra.mxu0 0.0
    %1117 = vmatprep.subr.mxu0 0.0
    %1118 = vmatpush1.msra.mxu0 0.0
    %1119 = vmatprep.subr.mxu0 0.0
    %1120 = vmatpush1.msra.mxu0 0.0
    %1121 = vmatprep.subr.mxu0 0.0
    %1122 = vmatpush1.msra.mxu0 0.0
    %1123 = vmatprep.subr.mxu0 0.0
    %1124 = vmatpush1.msra.mxu0 0.0
    %1125 = vmatprep.subr.mxu0 0.0
    %1126 = vmatpush1.msra.mxu0 0.0
    %1127 = vmatprep.subr.mxu0 0.0
    %1128 = vmatpush1.msra.mxu0 0.0
    %1129 = vmatprep.subr.mxu0 0.0
    %1130 = vmatpush1.msra.mxu0 0.0
    %1131 = vmatprep.subr.mxu0 0.0
    %1132 = vmatpush1.msra.mxu0 0.0
    %1133 = vmatprep.subr.mxu0 0.0
    %1134 = vmatpush1.msra.mxu0 0.0
    %1135 = vmatprep.subr.mxu0 0.0
    %1136 = vmatpush1.msra.mxu0 0.0
    %1137 = vmatprep.subr.mxu0 0.0
    %1138 = vmatpush1.msra.mxu0 0.0
    %1139 = vmatprep.subr.mxu0 0.0
    %1140 = vmatpush1.msra.mxu0 0.0
    %1141 = vmatprep.mubr.f32.mxu0 0.0
    %1142 = vmatmul.mubr.f32.gmra.mrb[0].mxu0 %v883
    %v1143 = vpop.f32.mrb[0].mxu0
    %v1144 = vadd.f32 %v1075, %v1143
    %v1145 = vpop.f32.mrb[0].mxu0
    %1146 = vmatprep.mubr.f32.mxu0 0.0
    %1147 = vmatmul.mubr.f32.gmra.mrb[0].mxu0 %v884
    %v1148 = vpop.f32.mrb[0].mxu0
    %v1149 = vadd.f32 %v1075, %v1148
    %v1150 = vpop.f32.mrb[0].mxu0
    %1151 = vdwg.mxu0
    %v1152 = vmax.f32 %v1144, 0.0
    %v1153 = vmax.f32 %v1149, 0.0
    %v1154 = vrot.slane %v1152, 4
    %v1155 = vmax.f32 %v1152, %v1154
    %v1156 = vrot.slane %v1155, 2
    %v1157 = vmax.f32 %v1155, %v1156
    %v1158 = vrot.slane %v1157, 1
    %v1159 = vmax.f32 %v1157, %v1158
    %v1160 = vrot.slane %v1153, 4
    %v1161 = vmax.f32 %v1153, %v1160
    %v1162 = vrot.slane %v1161, 2
    %v1163 = vmax.f32 %v1161, %v1162
    %v1164 = vrot.slane %v1163, 1
    %v1165 = vmax.f32 %v1163, %v1164
    %s1166 = scalar_lea.vmem [#allocation7], 256
    %v1167 = vld [vmem:[%s1166] sm:$0xff]
    %v1168 = vld [vmem:[%s1166 + $0x8] sm:$0xff]
    %v1169 = vld [vmem:[%s1166 + $0x10] sm:$0xff]
    %v1170 = vld [vmem:[%s1166 + $0x18] sm:$0xff]
    %v1171 = vld [vmem:[%s1166 + $0x20] sm:$0xff]
    %v1172 = vld [vmem:[%s1166 + $0x28] sm:$0xff]
    %v1173 = vld [vmem:[%s1166 + $0x30] sm:$0xff]
    %v1174 = vld [vmem:[%s1166 + $0x38] sm:$0xff]
    %v1175 = vld [vmem:[%s1166 + $0x40] sm:$0xff]
    %v1176 = vld [vmem:[%s1166 + $0x48] sm:$0xff]
    %v1177 = vld [vmem:[%s1166 + $0x50] sm:$0xff]
    %v1178 = vld [vmem:[%s1166 + $0x58] sm:$0xff]
    %v1179 = vld [vmem:[%s1166 + $0x60] sm:$0xff]
    %v1180 = vld [vmem:[%s1166 + $0x68] sm:$0xff]
    %v1181 = vld [vmem:[%s1166 + $0x70] sm:$0xff]
    %v1182 = vld [vmem:[%s1166 + $0x78] sm:$0xff]
    %s1183 = scalar_lea.vmem %s7, 2
    %v1184 = vld [vmem:[%s1183] sm:$0x1]
    %v1186 = vlaneseq
    %v1187 = vshrl.u32 %v1186, 7
    %v1188 = vsub.s32 0, %v1187
    %v1189 = vrot.slane %v1184, %v1188
    %v1193 = vsel %vm326, %v1165, %v1159
    %1195 = vmatprep.subr.mxu0 0.0
    %1196 = vmatpush1.msra.mxu0 %v1167
    %1197 = vmatprep.subr.mxu0 0.0
    %1198 = vmatpush1.msra.mxu0 %v1168
    %1199 = vmatprep.subr.mxu0 0.0
    %1200 = vmatpush1.msra.mxu0 %v1169
    %1201 = vmatprep.subr.mxu0 0.0
    %1202 = vmatpush1.msra.mxu0 %v1170
    %1203 = vmatprep.subr.mxu0 0.0
    %1204 = vmatpush1.msra.mxu0 %v1171
    %1205 = vmatprep.subr.mxu0 0.0
    %1206 = vmatpush1.msra.mxu0 %v1172
    %1207 = vmatprep.subr.mxu0 0.0
    %1208 = vmatpush1.msra.mxu0 %v1173
    %1209 = vmatprep.subr.mxu0 0.0
    %1210 = vmatpush1.msra.mxu0 %v1174
    %1211 = vmatprep.subr.mxu0 0.0
    %1212 = vmatpush1.msra.mxu0 %v1175
    %1213 = vmatprep.subr.mxu0 0.0
    %1214 = vmatpush1.msra.mxu0 %v1176
    %1215 = vmatprep.subr.mxu0 0.0
    %1216 = vmatpush1.msra.mxu0 %v1177
    %1217 = vmatprep.subr.mxu0 0.0
    %1218 = vmatpush1.msra.mxu0 %v1178
    %1219 = vmatprep.subr.mxu0 0.0
    %1220 = vmatpush1.msra.mxu0 %v1179
    %1221 = vmatprep.subr.mxu0 0.0
    %1222 = vmatpush1.msra.mxu0 %v1180
    %1223 = vmatprep.subr.mxu0 0.0
    %1224 = vmatpush1.msra.mxu0 %v1181
    %1225 = vmatprep.subr.mxu0 0.0
    %1226 = vmatpush1.msra.mxu0 %v1182
    %1227 = vmatprep.subr.mxu0 0.0
    %1228 = vmatpush1.msra.mxu0 0.0
    %1229 = vmatprep.subr.mxu0 0.0
    %1230 = vmatpush1.msra.mxu0 0.0
    %1231 = vmatprep.subr.mxu0 0.0
    %1232 = vmatpush1.msra.mxu0 0.0
    %1233 = vmatprep.subr.mxu0 0.0
    %1234 = vmatpush1.msra.mxu0 0.0
    %1235 = vmatprep.subr.mxu0 0.0
    %1236 = vmatpush1.msra.mxu0 0.0
    %1237 = vmatprep.subr.mxu0 0.0
    %1238 = vmatpush1.msra.mxu0 0.0
    %1239 = vmatprep.subr.mxu0 0.0
    %1240 = vmatpush1.msra.mxu0 0.0
    %1241 = vmatprep.subr.mxu0 0.0
    %1242 = vmatpush1.msra.mxu0 0.0
    %1243 = vmatprep.subr.mxu0 0.0
    %1244 = vmatpush1.msra.mxu0 0.0
    %1245 = vmatprep.subr.mxu0 0.0
    %1246 = vmatpush1.msra.mxu0 0.0
    %1247 = vmatprep.subr.mxu0 0.0
    %1248 = vmatpush1.msra.mxu0 0.0
    %1249 = vmatprep.subr.mxu0 0.0
    %1250 = vmatpush1.msra.mxu0 0.0
    %1251 = vmatprep.subr.mxu0 0.0
    %1252 = vmatpush1.msra.mxu0 0.0
    %1253 = vmatprep.subr.mxu0 0.0
    %1254 = vmatpush1.msra.mxu0 0.0
    %1255 = vmatprep.subr.mxu0 0.0
    %1256 = vmatpush1.msra.mxu0 0.0
    %1257 = vmatprep.subr.mxu0 0.0
    %1258 = vmatpush1.msra.mxu0 0.0
    %1259 = vmatprep.mubr.f32.mxu0 0.0
    %1260 = vmatmul.mubr.f32.gmra.mrb[0].mxu0 %v1193
    %v1261 = vpop.f32.mrb[0].mxu0
    %v1262 = vadd.f32 %v1189, %v1261
    %v1263 = vpop.f32.mrb[0].mxu0
    %1264 = vdwg.mxu0
    %s1265 = scalar_lea.vmem [#allocation5], 256
    %v1266 = vld [vmem:[%s1265] sm:$0xff]
    %v1267 = vld [vmem:[%s1265 + $0x8] sm:$0xff]
    %v1268 = vld [vmem:[%s1265 + $0x10] sm:$0xff]
    %v1269 = vld [vmem:[%s1265 + $0x18] sm:$0xff]
    %v1270 = vld [vmem:[%s1265 + $0x20] sm:$0xff]
    %v1271 = vld [vmem:[%s1265 + $0x28] sm:$0xff]
    %v1272 = vld [vmem:[%s1265 + $0x30] sm:$0xff]
    %v1273 = vld [vmem:[%s1265 + $0x38] sm:$0xff]
    %v1274 = vld [vmem:[%s1265 + $0x40] sm:$0xff]
    %v1275 = vld [vmem:[%s1265 + $0x48] sm:$0xff]
    %v1276 = vld [vmem:[%s1265 + $0x50] sm:$0xff]
    %v1277 = vld [vmem:[%s1265 + $0x58] sm:$0xff]
    %v1278 = vld [vmem:[%s1265 + $0x60] sm:$0xff]
    %v1279 = vld [vmem:[%s1265 + $0x68] sm:$0xff]
    %v1280 = vld [vmem:[%s1265 + $0x70] sm:$0xff]
    %v1281 = vld [vmem:[%s1265 + $0x78] sm:$0xff]
    %1282 = vmatprep.subr.mxu0 0.0
    %1283 = vmatpush1.msra.mxu0 %v1266
    %1284 = vmatprep.subr.mxu0 0.0
    %1285 = vmatpush1.msra.mxu0 %v1267
    %1286 = vmatprep.subr.mxu0 0.0
    %1287 = vmatpush1.msra.mxu0 %v1268
    %1288 = vmatprep.subr.mxu0 0.0
    %1289 = vmatpush1.msra.mxu0 %v1269
    %1290 = vmatprep.subr.mxu0 0.0
    %1291 = vmatpush1.msra.mxu0 %v1270
    %1292 = vmatprep.subr.mxu0 0.0
    %1293 = vmatpush1.msra.mxu0 %v1271
    %1294 = vmatprep.subr.mxu0 0.0
    %1295 = vmatpush1.msra.mxu0 %v1272
    %1296 = vmatprep.subr.mxu0 0.0
    %1297 = vmatpush1.msra.mxu0 %v1273
    %1298 = vmatprep.subr.mxu0 0.0
    %1299 = vmatpush1.msra.mxu0 %v1274
    %1300 = vmatprep.subr.mxu0 0.0
    %1301 = vmatpush1.msra.mxu0 %v1275
    %1302 = vmatprep.subr.mxu0 0.0
    %1303 = vmatpush1.msra.mxu0 %v1276
    %1304 = vmatprep.subr.mxu0 0.0
    %1305 = vmatpush1.msra.mxu0 %v1277
    %1306 = vmatprep.subr.mxu0 0.0
    %1307 = vmatpush1.msra.mxu0 %v1278
    %1308 = vmatprep.subr.mxu0 0.0
    %1309 = vmatpush1.msra.mxu0 %v1279
    %1310 = vmatprep.subr.mxu0 0.0
    %1311 = vmatpush1.msra.mxu0 %v1280
    %1312 = vmatprep.subr.mxu0 0.0
    %1313 = vmatpush1.msra.mxu0 %v1281
    %1314 = vmatprep.subr.mxu0 0.0
    %1315 = vmatpush1.msra.mxu0 0.0
    %1316 = vmatprep.subr.mxu0 0.0
    %1317 = vmatpush1.msra.mxu0 0.0
    %1318 = vmatprep.subr.mxu0 0.0
    %1319 = vmatpush1.msra.mxu0 0.0
    %1320 = vmatprep.subr.mxu0 0.0
    %1321 = vmatpush1.msra.mxu0 0.0
    %1322 = vmatprep.subr.mxu0 0.0
    %1323 = vmatpush1.msra.mxu0 0.0
    %1324 = vmatprep.subr.mxu0 0.0
    %1325 = vmatpush1.msra.mxu0 0.0
    %1326 = vmatprep.subr.mxu0 0.0
    %1327 = vmatpush1.msra.mxu0 0.0
    %1328 = vmatprep.subr.mxu0 0.0
    %1329 = vmatpush1.msra.mxu0 0.0
    %1330 = vmatprep.subr.mxu0 0.0
    %1331 = vmatpush1.msra.mxu0 0.0
    %1332 = vmatprep.subr.mxu0 0.0
    %1333 = vmatpush1.msra.mxu0 0.0
    %1334 = vmatprep.subr.mxu0 0.0
    %1335 = vmatpush1.msra.mxu0 0.0
    %1336 = vmatprep.subr.mxu0 0.0
    %1337 = vmatpush1.msra.mxu0 0.0
    %1338 = vmatprep.subr.mxu0 0.0
    %1339 = vmatpush1.msra.mxu0 0.0
    %1340 = vmatprep.subr.mxu0 0.0
    %1341 = vmatpush1.msra.mxu0 0.0
    %1342 = vmatprep.subr.mxu0 0.0
    %1343 = vmatpush1.msra.mxu0 0.0
    %1344 = vmatprep.subr.mxu0 0.0
    %1345 = vmatpush1.msra.mxu0 0.0
    %1346 = vmatprep.mubr.f32.mxu0 0.0
    %1347 = vmatmul.mubr.f32.gmra.mrb[0].mxu0 %v1152
    %v1348 = vpop.f32.mrb[0].mxu0
    %v1349 = vadd.f32 0.0, %v1348
    %v1350 = vpop.f32.mrb[0].mxu0
    %1351 = vmatprep.mubr.f32.mxu0 0.0
    %1352 = vmatmul.mubr.f32.gmra.mrb[0].mxu0 %v1153
    %v1353 = vpop.f32.mrb[0].mxu0
    %v1354 = vadd.f32 0.0, %v1353
    %v1355 = vpop.f32.mrb[0].mxu0
    %1356 = vdwg.mxu0
    %v1359 = vunpack.c.l.s4 1966171168
    %v1360 = vunpack.c.0.s8 %v1359
    %v1361 = vlaneseq
    %v1362 = vshrl.u32 %v1361, 7
    %v1363 = vsub.s32 %v1360, %v1362
    %v1364 = vrot.slane %v1262, %v1363
    %v1365 = vcombine.high %v1364, %v1364
    %v1367 = vunpack.c.l.s4 1966171168
    %v1368 = vunpack.c.0.s8 %v1367
    %v1369 = vlaneseq
    %v1370 = vshrl.u32 %v1369, 7
    %v1371 = vsub.s32 %v1368, %v1370
    %v1372 = vrot.slane %v1364, %v1371
    %v1374 = vunpack.c.l.s4 1966171168
    %v1375 = vunpack.c.0.s8 %v1374
    %v1376 = vlaneseq
    %v1377 = vshrl.u32 %v1376, 7
    %v1378 = vsub.s32 %v1375, %v1377
    %v1379 = vrot.slane %v1365, %v1378
    %v1380 = vlaneseq
    %v1381 = vshrl.u32 %v1380, 7
    %v1382 = vsub.s32 0, %v1381
    %v1383 = vrot.slane %v1372, %v1382
    %v1384 = vlaneseq
    %v1385 = vshrl.u32 %v1384, 7
    %v1386 = vsub.s32 0, %v1385
    %v1387 = vrot.slane %v1379, %v1386
    %v1390 = vadd.f32 %v1349, %v1383
    %v1391 = vadd.f32 %v1354, %v1387
    %v1392 = vmax.f32 %v1390, 0.0
    %v1393 = vmax.f32 %v1391, 0.0
    %s1394 = scalar_lea.vmem [#allocation8], 256
    %v1395 = vld [vmem:[%s1394] sm:$0xff]
    %v1396 = vld [vmem:[%s1394 + $0x8] sm:$0xff]
    %v1397 = vld [vmem:[%s1394 + $0x10] sm:$0xff]
    %v1398 = vld [vmem:[%s1394 + $0x18] sm:$0xff]
    %v1399 = vld [vmem:[%s1394 + $0x20] sm:$0xff]
    %v1400 = vld [vmem:[%s1394 + $0x28] sm:$0xff]
    %v1401 = vld [vmem:[%s1394 + $0x30] sm:$0xff]
    %v1402 = vld [vmem:[%s1394 + $0x38] sm:$0xff]
    %v1403 = vld [vmem:[%s1394 + $0x40] sm:$0xff]
    %v1404 = vld [vmem:[%s1394 + $0x48] sm:$0xff]
    %v1405 = vld [vmem:[%s1394 + $0x50] sm:$0xff]
    %v1406 = vld [vmem:[%s1394 + $0x58] sm:$0xff]
    %v1407 = vld [vmem:[%s1394 + $0x60] sm:$0xff]
    %v1408 = vld [vmem:[%s1394 + $0x68] sm:$0xff]
    %v1409 = vld [vmem:[%s1394 + $0x70] sm:$0xff]
    %v1410 = vld [vmem:[%s1394 + $0x78] sm:$0xff]
    %1411 = vmatprep.subr.mxu0 0.0
    %1412 = vmatpush1.msra.mxu0 %v1395
    %1413 = vmatprep.subr.mxu0 0.0
    %1414 = vmatpush1.msra.mxu0 %v1396
    %1415 = vmatprep.subr.mxu0 0.0
    %1416 = vmatpush1.msra.mxu0 %v1397
    %1417 = vmatprep.subr.mxu0 0.0
    %1418 = vmatpush1.msra.mxu0 %v1398
    %1419 = vmatprep.subr.mxu0 0.0
    %1420 = vmatpush1.msra.mxu0 %v1399
    %1421 = vmatprep.subr.mxu0 0.0
    %1422 = vmatpush1.msra.mxu0 %v1400
    %1423 = vmatprep.subr.mxu0 0.0
    %1424 = vmatpush1.msra.mxu0 %v1401
    %1425 = vmatprep.subr.mxu0 0.0
    %1426 = vmatpush1.msra.mxu0 %v1402
    %1427 = vmatprep.subr.mxu0 0.0
    %1428 = vmatpush1.msra.mxu0 %v1403
    %1429 = vmatprep.subr.mxu0 0.0
    %1430 = vmatpush1.msra.mxu0 %v1404
    %1431 = vmatprep.subr.mxu0 0.0
    %1432 = vmatpush1.msra.mxu0 %v1405
    %1433 = vmatprep.subr.mxu0 0.0
    %1434 = vmatpush1.msra.mxu0 %v1406
    %1435 = vmatprep.subr.mxu0 0.0
    %1436 = vmatpush1.msra.mxu0 %v1407
    %1437 = vmatprep.subr.mxu0 0.0
    %1438 = vmatpush1.msra.mxu0 %v1408
    %1439 = vmatprep.subr.mxu0 0.0
    %1440 = vmatpush1.msra.mxu0 %v1409
    %1441 = vmatprep.subr.mxu0 0.0
    %1442 = vmatpush1.msra.mxu0 %v1410
    %1443 = vmatprep.subr.mxu0 0.0
    %1444 = vmatpush1.msra.mxu0 0.0
    %1445 = vmatprep.subr.mxu0 0.0
    %1446 = vmatpush1.msra.mxu0 0.0
    %1447 = vmatprep.subr.mxu0 0.0
    %1448 = vmatpush1.msra.mxu0 0.0
    %1449 = vmatprep.subr.mxu0 0.0
    %1450 = vmatpush1.msra.mxu0 0.0
    %1451 = vmatprep.subr.mxu0 0.0
    %1452 = vmatpush1.msra.mxu0 0.0
    %1453 = vmatprep.subr.mxu0 0.0
    %1454 = vmatpush1.msra.mxu0 0.0
    %1455 = vmatprep.subr.mxu0 0.0
    %1456 = vmatpush1.msra.mxu0 0.0
    %1457 = vmatprep.subr.mxu0 0.0
    %1458 = vmatpush1.msra.mxu0 0.0
    %1459 = vmatprep.subr.mxu0 0.0
    %1460 = vmatpush1.msra.mxu0 0.0
    %1461 = vmatprep.subr.mxu0 0.0
    %1462 = vmatpush1.msra.mxu0 0.0
    %1463 = vmatprep.subr.mxu0 0.0
    %1464 = vmatpush1.msra.mxu0 0.0
    %1465 = vmatprep.subr.mxu0 0.0
    %1466 = vmatpush1.msra.mxu0 0.0
    %1467 = vmatprep.subr.mxu0 0.0
    %1468 = vmatpush1.msra.mxu0 0.0
    %1469 = vmatprep.subr.mxu0 0.0
    %1470 = vmatpush1.msra.mxu0 0.0
    %1471 = vmatprep.subr.mxu0 0.0
    %1472 = vmatpush1.msra.mxu0 0.0
    %1473 = vmatprep.subr.mxu0 0.0
    %1474 = vmatpush1.msra.mxu0 0.0
    %1475 = vmatprep.mubr.f32.mxu0 0.0
    %1476 = vmatmul.mubr.f32.gmra.mrb[0].mxu0 %v1392
    %v1477 = vpop.f32.mrb[0].mxu0
    %v1478 = vadd.f32 0.0, %v1477
    %v1479 = vpop.f32.mrb[0].mxu0
    %1480 = vmatprep.mubr.f32.mxu0 0.0
    %1481 = vmatmul.mubr.f32.gmra.mrb[0].mxu0 %v1393
    %v1482 = vpop.f32.mrb[0].mxu0
    %v1483 = vadd.f32 0.0, %v1482
    %v1484 = vpop.f32.mrb[0].mxu0
    %1485 = vdwg.mxu0
    %v1486 = vadd.f32 %v1044, %v1478
    %v1487 = vadd.f32 %v1049, %v1483
    %s1488 = scalar_lea.vmem [#allocation2], 384
    %v1489 = vld [vmem:[%s1488] sm:$0xff]
    %v1490 = vld [vmem:[%s1488 + $0x8] sm:$0xff]
    %v1491 = vld [vmem:[%s1488 + $0x10] sm:$0xff]
    %v1492 = vld [vmem:[%s1488 + $0x18] sm:$0xff]
    %v1493 = vld [vmem:[%s1488 + $0x20] sm:$0xff]
    %v1494 = vld [vmem:[%s1488 + $0x28] sm:$0xff]
    %v1495 = vld [vmem:[%s1488 + $0x30] sm:$0xff]
    %v1496 = vld [vmem:[%s1488 + $0x38] sm:$0xff]
    %v1497 = vld [vmem:[%s1488 + $0x40] sm:$0xff]
    %v1498 = vld [vmem:[%s1488 + $0x48] sm:$0xff]
    %v1499 = vld [vmem:[%s1488 + $0x50] sm:$0xff]
    %v1500 = vld [vmem:[%s1488 + $0x58] sm:$0xff]
    %v1501 = vld [vmem:[%s1488 + $0x60] sm:$0xff]
    %v1502 = vld [vmem:[%s1488 + $0x68] sm:$0xff]
    %v1503 = vld [vmem:[%s1488 + $0x70] sm:$0xff]
    %v1504 = vld [vmem:[%s1488 + $0x78] sm:$0xff]
    %s1505 = scalar_lea.vmem %s4, 3
    %v1506 = vld [vmem:[%s1505] sm:$0x1]
    %v1508 = vlaneseq
    %v1509 = vshrl.u32 %v1508, 7
    %v1510 = vsub.s32 0, %v1509
    %v1511 = vrot.slane %v1506, %v1510
    %1513 = vmatprep.subr.mxu0 0.0
    %1514 = vmatpush1.msra.mxu0 %v1489
    %1515 = vmatprep.subr.mxu0 0.0
    %1516 = vmatpush1.msra.mxu0 %v1490
    %1517 = vmatprep.subr.mxu0 0.0
    %1518 = vmatpush1.msra.mxu0 %v1491
    %1519 = vmatprep.subr.mxu0 0.0
    %1520 = vmatpush1.msra.mxu0 %v1492
    %1521 = vmatprep.subr.mxu0 0.0
    %1522 = vmatpush1.msra.mxu0 %v1493
    %1523 = vmatprep.subr.mxu0 0.0
    %1524 = vmatpush1.msra.mxu0 %v1494
    %1525 = vmatprep.subr.mxu0 0.0
    %1526 = vmatpush1.msra.mxu0 %v1495
    %1527 = vmatprep.subr.mxu0 0.0
    %1528 = vmatpush1.msra.mxu0 %v1496
    %1529 = vmatprep.subr.mxu0 0.0
    %1530 = vmatpush1.msra.mxu0 %v1497
    %1531 = vmatprep.subr.mxu0 0.0
    %1532 = vmatpush1.msra.mxu0 %v1498
    %1533 = vmatprep.subr.mxu0 0.0
    %1534 = vmatpush1.msra.mxu0 %v1499
    %1535 = vmatprep.subr.mxu0 0.0
    %1536 = vmatpush1.msra.mxu0 %v1500
    %1537 = vmatprep.subr.mxu0 0.0
    %1538 = vmatpush1.msra.mxu0 %v1501
    %1539 = vmatprep.subr.mxu0 0.0
    %1540 = vmatpush1.msra.mxu0 %v1502
    %1541 = vmatprep.subr.mxu0 0.0
    %1542 = vmatpush1.msra.mxu0 %v1503
    %1543 = vmatprep.subr.mxu0 0.0
    %1544 = vmatpush1.msra.mxu0 %v1504
    %1545 = vmatprep.subr.mxu0 0.0
    %1546 = vmatpush1.msra.mxu0 0.0
    %1547 = vmatprep.subr.mxu0 0.0
    %1548 = vmatpush1.msra.mxu0 0.0
    %1549 = vmatprep.subr.mxu0 0.0
    %1550 = vmatpush1.msra.mxu0 0.0
    %1551 = vmatprep.subr.mxu0 0.0
    %1552 = vmatpush1.msra.mxu0 0.0
    %1553 = vmatprep.subr.mxu0 0.0
    %1554 = vmatpush1.msra.mxu0 0.0
    %1555 = vmatprep.subr.mxu0 0.0
    %1556 = vmatpush1.msra.mxu0 0.0
    %1557 = vmatprep.subr.mxu0 0.0
    %1558 = vmatpush1.msra.mxu0 0.0
    %1559 = vmatprep.subr.mxu0 0.0
    %1560 = vmatpush1.msra.mxu0 0.0
    %1561 = vmatprep.subr.mxu0 0.0
    %1562 = vmatpush1.msra.mxu0 0.0
    %1563 = vmatprep.subr.mxu0 0.0
    %1564 = vmatpush1.msra.mxu0 0.0
    %1565 = vmatprep.subr.mxu0 0.0
    %1566 = vmatpush1.msra.mxu0 0.0
    %1567 = vmatprep.subr.mxu0 0.0
    %1568 = vmatpush1.msra.mxu0 0.0
    %1569 = vmatprep.subr.mxu0 0.0
    %1570 = vmatpush1.msra.mxu0 0.0
    %1571 = vmatprep.subr.mxu0 0.0
    %1572 = vmatpush1.msra.mxu0 0.0
    %1573 = vmatprep.subr.mxu0 0.0
    %1574 = vmatpush1.msra.mxu0 0.0
    %1575 = vmatprep.subr.mxu0 0.0
    %1576 = vmatpush1.msra.mxu0 0.0
    %1577 = vmatprep.mubr.f32.mxu0 0.0
    %1578 = vmatmul.mubr.f32.gmra.mrb[0].mxu0 %v1392
    %v1579 = vpop.f32.mrb[0].mxu0
    %v1580 = vadd.f32 %v1511, %v1579
    %v1581 = vpop.f32.mrb[0].mxu0
    %1582 = vmatprep.mubr.f32.mxu0 0.0
    %1583 = vmatmul.mubr.f32.gmra.mrb[0].mxu0 %v1393
    %v1584 = vpop.f32.mrb[0].mxu0
    %v1585 = vadd.f32 %v1511, %v1584
    %v1586 = vpop.f32.mrb[0].mxu0
    %1587 = vdwg.mxu0
    %v1588 = vmax.f32 %v1580, 0.0
    %v1589 = vmax.f32 %v1585, 0.0
    %v1590 = vrot.slane %v1588, 4
    %v1591 = vmax.f32 %v1588, %v1590
    %v1592 = vrot.slane %v1591, 2
    %v1593 = vmax.f32 %v1591, %v1592
    %v1594 = vrot.slane %v1593, 1
    %v1595 = vmax.f32 %v1593, %v1594
    %v1596 = vrot.slane %v1589, 4
    %v1597 = vmax.f32 %v1589, %v1596
    %v1598 = vrot.slane %v1597, 2
    %v1599 = vmax.f32 %v1597, %v1598
    %v1600 = vrot.slane %v1599, 1
    %v1601 = vmax.f32 %v1599, %v1600
    %s1602 = scalar_lea.vmem [#allocation7], 384
    %v1603 = vld [vmem:[%s1602] sm:$0xff]
    %v1604 = vld [vmem:[%s1602 + $0x8] sm:$0xff]
    %v1605 = vld [vmem:[%s1602 + $0x10] sm:$0xff]
    %v1606 = vld [vmem:[%s1602 + $0x18] sm:$0xff]
    %v1607 = vld [vmem:[%s1602 + $0x20] sm:$0xff]
    %v1608 = vld [vmem:[%s1602 + $0x28] sm:$0xff]
    %v1609 = vld [vmem:[%s1602 + $0x30] sm:$0xff]
    %v1610 = vld [vmem:[%s1602 + $0x38] sm:$0xff]
    %v1611 = vld [vmem:[%s1602 + $0x40] sm:$0xff]
    %v1612 = vld [vmem:[%s1602 + $0x48] sm:$0xff]
    %v1613 = vld [vmem:[%s1602 + $0x50] sm:$0xff]
    %v1614 = vld [vmem:[%s1602 + $0x58] sm:$0xff]
    %v1615 = vld [vmem:[%s1602 + $0x60] sm:$0xff]
    %v1616 = vld [vmem:[%s1602 + $0x68] sm:$0xff]
    %v1617 = vld [vmem:[%s1602 + $0x70] sm:$0xff]
    %v1618 = vld [vmem:[%s1602 + $0x78] sm:$0xff]
    %s1619 = scalar_lea.vmem %s7, 3
    %v1620 = vld [vmem:[%s1619] sm:$0x1]
    %v1622 = vlaneseq
    %v1623 = vshrl.u32 %v1622, 7
    %v1624 = vsub.s32 0, %v1623
    %v1625 = vrot.slane %v1620, %v1624
    %v1629 = vsel %vm326, %v1601, %v1595
    %1631 = vmatprep.subr.mxu0 0.0
    %1632 = vmatpush1.msra.mxu0 %v1603
    %1633 = vmatprep.subr.mxu0 0.0
    %1634 = vmatpush1.msra.mxu0 %v1604
    %1635 = vmatprep.subr.mxu0 0.0
    %1636 = vmatpush1.msra.mxu0 %v1605
    %1637 = vmatprep.subr.mxu0 0.0
    %1638 = vmatpush1.msra.mxu0 %v1606
    %1639 = vmatprep.subr.mxu0 0.0
    %1640 = vmatpush1.msra.mxu0 %v1607
    %1641 = vmatprep.subr.mxu0 0.0
    %1642 = vmatpush1.msra.mxu0 %v1608
    %1643 = vmatprep.subr.mxu0 0.0
    %1644 = vmatpush1.msra.mxu0 %v1609
    %1645 = vmatprep.subr.mxu0 0.0
    %1646 = vmatpush1.msra.mxu0 %v1610
    %1647 = vmatprep.subr.mxu0 0.0
    %1648 = vmatpush1.msra.mxu0 %v1611
    %1649 = vmatprep.subr.mxu0 0.0
    %1650 = vmatpush1.msra.mxu0 %v1612
    %1651 = vmatprep.subr.mxu0 0.0
    %1652 = vmatpush1.msra.mxu0 %v1613
    %1653 = vmatprep.subr.mxu0 0.0
    %1654 = vmatpush1.msra.mxu0 %v1614
    %1655 = vmatprep.subr.mxu0 0.0
    %1656 = vmatpush1.msra.mxu0 %v1615
    %1657 = vmatprep.subr.mxu0 0.0
    %1658 = vmatpush1.msra.mxu0 %v1616
    %1659 = vmatprep.subr.mxu0 0.0
    %1660 = vmatpush1.msra.mxu0 %v1617
    %1661 = vmatprep.subr.mxu0 0.0
    %1662 = vmatpush1.msra.mxu0 %v1618
    %1663 = vmatprep.subr.mxu0 0.0
    %1664 = vmatpush1.msra.mxu0 0.0
    %1665 = vmatprep.subr.mxu0 0.0
    %1666 = vmatpush1.msra.mxu0 0.0
    %1667 = vmatprep.subr.mxu0 0.0
    %1668 = vmatpush1.msra.mxu0 0.0
    %1669 = vmatprep.subr.mxu0 0.0
    %1670 = vmatpush1.msra.mxu0 0.0
    %1671 = vmatprep.subr.mxu0 0.0
    %1672 = vmatpush1.msra.mxu0 0.0
    %1673 = vmatprep.subr.mxu0 0.0
    %1674 = vmatpush1.msra.mxu0 0.0
    %1675 = vmatprep.subr.mxu0 0.0
    %1676 = vmatpush1.msra.mxu0 0.0
    %1677 = vmatprep.subr.mxu0 0.0
    %1678 = vmatpush1.msra.mxu0 0.0
    %1679 = vmatprep.subr.mxu0 0.0
    %1680 = vmatpush1.msra.mxu0 0.0
    %1681 = vmatprep.subr.mxu0 0.0
    %1682 = vmatpush1.msra.mxu0 0.0
    %1683 = vmatprep.subr.mxu0 0.0
    %1684 = vmatpush1.msra.mxu0 0.0
    %1685 = vmatprep.subr.mxu0 0.0
    %1686 = vmatpush1.msra.mxu0 0.0
    %1687 = vmatprep.subr.mxu0 0.0
    %1688 = vmatpush1.msra.mxu0 0.0
    %1689 = vmatprep.subr.mxu0 0.0
    %1690 = vmatpush1.msra.mxu0 0.0
    %1691 = vmatprep.subr.mxu0 0.0
    %1692 = vmatpush1.msra.mxu0 0.0
    %1693 = vmatprep.subr.mxu0 0.0
    %1694 = vmatpush1.msra.mxu0 0.0
    %1695 = vmatprep.mubr.f32.mxu0 0.0
    %1696 = vmatmul.mubr.f32.gmra.mrb[0].mxu0 %v1629
    %v1697 = vpop.f32.mrb[0].mxu0
    %v1698 = vadd.f32 %v1625, %v1697
    %v1699 = vpop.f32.mrb[0].mxu0
    %1700 = vdwg.mxu0
    %s1701 = scalar_lea.vmem [#allocation5], 384
    %v1702 = vld [vmem:[%s1701] sm:$0xff]
    %v1703 = vld [vmem:[%s1701 + $0x8] sm:$0xff]
    %v1704 = vld [vmem:[%s1701 + $0x10] sm:$0xff]
    %v1705 = vld [vmem:[%s1701 + $0x18] sm:$0xff]
    %v1706 = vld [vmem:[%s1701 + $0x20] sm:$0xff]
    %v1707 = vld [vmem:[%s1701 + $0x28] sm:$0xff]
    %v1708 = vld [vmem:[%s1701 + $0x30] sm:$0xff]
    %v1709 = vld [vmem:[%s1701 + $0x38] sm:$0xff]
    %v1710 = vld [vmem:[%s1701 + $0x40] sm:$0xff]
    %v1711 = vld [vmem:[%s1701 + $0x48] sm:$0xff]
    %v1712 = vld [vmem:[%s1701 + $0x50] sm:$0xff]
    %v1713 = vld [vmem:[%s1701 + $0x58] sm:$0xff]
    %v1714 = vld [vmem:[%s1701 + $0x60] sm:$0xff]
    %v1715 = vld [vmem:[%s1701 + $0x68] sm:$0xff]
    %v1716 = vld [vmem:[%s1701 + $0x70] sm:$0xff]
    %v1717 = vld [vmem:[%s1701 + $0x78] sm:$0xff]
    %1718 = vmatprep.subr.mxu0 0.0
    %1719 = vmatpush1.msra.mxu0 %v1702
    %1720 = vmatprep.subr.mxu0 0.0
    %1721 = vmatpush1.msra.mxu0 %v1703
    %1722 = vmatprep.subr.mxu0 0.0
    %1723 = vmatpush1.msra.mxu0 %v1704
    %1724 = vmatprep.subr.mxu0 0.0
    %1725 = vmatpush1.msra.mxu0 %v1705
    %1726 = vmatprep.subr.mxu0 0.0
    %1727 = vmatpush1.msra.mxu0 %v1706
    %1728 = vmatprep.subr.mxu0 0.0
    %1729 = vmatpush1.msra.mxu0 %v1707
    %1730 = vmatprep.subr.mxu0 0.0
    %1731 = vmatpush1.msra.mxu0 %v1708
    %1732 = vmatprep.subr.mxu0 0.0
    %1733 = vmatpush1.msra.mxu0 %v1709
    %1734 = vmatprep.subr.mxu0 0.0
    %1735 = vmatpush1.msra.mxu0 %v1710
    %1736 = vmatprep.subr.mxu0 0.0
    %1737 = vmatpush1.msra.mxu0 %v1711
    %1738 = vmatprep.subr.mxu0 0.0
    %1739 = vmatpush1.msra.mxu0 %v1712
    %1740 = vmatprep.subr.mxu0 0.0
    %1741 = vmatpush1.msra.mxu0 %v1713
    %1742 = vmatprep.subr.mxu0 0.0
    %1743 = vmatpush1.msra.mxu0 %v1714
    %1744 = vmatprep.subr.mxu0 0.0
    %1745 = vmatpush1.msra.mxu0 %v1715
    %1746 = vmatprep.subr.mxu0 0.0
    %1747 = vmatpush1.msra.mxu0 %v1716
    %1748 = vmatprep.subr.mxu0 0.0
    %1749 = vmatpush1.msra.mxu0 %v1717
    %1750 = vmatprep.subr.mxu0 0.0
    %1751 = vmatpush1.msra.mxu0 0.0
    %1752 = vmatprep.subr.mxu0 0.0
    %1753 = vmatpush1.msra.mxu0 0.0
    %1754 = vmatprep.subr.mxu0 0.0
    %1755 = vmatpush1.msra.mxu0 0.0
    %1756 = vmatprep.subr.mxu0 0.0
    %1757 = vmatpush1.msra.mxu0 0.0
    %1758 = vmatprep.subr.mxu0 0.0
    %1759 = vmatpush1.msra.mxu0 0.0
    %1760 = vmatprep.subr.mxu0 0.0
    %1761 = vmatpush1.msra.mxu0 0.0
    %1762 = vmatprep.subr.mxu0 0.0
    %1763 = vmatpush1.msra.mxu0 0.0
    %1764 = vmatprep.subr.mxu0 0.0
    %1765 = vmatpush1.msra.mxu0 0.0
    %1766 = vmatprep.subr.mxu0 0.0
    %1767 = vmatpush1.msra.mxu0 0.0
    %1768 = vmatprep.subr.mxu0 0.0
    %1769 = vmatpush1.msra.mxu0 0.0
    %1770 = vmatprep.subr.mxu0 0.0
    %1771 = vmatpush1.msra.mxu0 0.0
    %1772 = vmatprep.subr.mxu0 0.0
    %1773 = vmatpush1.msra.mxu0 0.0
    %1774 = vmatprep.subr.mxu0 0.0
    %1775 = vmatpush1.msra.mxu0 0.0
    %1776 = vmatprep.subr.mxu0 0.0
    %1777 = vmatpush1.msra.mxu0 0.0
    %1778 = vmatprep.subr.mxu0 0.0
    %1779 = vmatpush1.msra.mxu0 0.0
    %1780 = vmatprep.subr.mxu0 0.0
    %1781 = vmatpush1.msra.mxu0 0.0
    %1782 = vmatprep.mubr.f32.mxu0 0.0
    %1783 = vmatmul.mubr.f32.gmra.mrb[0].mxu0 %v1588
    %v1784 = vpop.f32.mrb[0].mxu0
    %v1785 = vadd.f32 0.0, %v1784
    %v1786 = vpop.f32.mrb[0].mxu0
    %1787 = vmatprep.mubr.f32.mxu0 0.0
    %1788 = vmatmul.mubr.f32.gmra.mrb[0].mxu0 %v1589
    %v1789 = vpop.f32.mrb[0].mxu0
    %v1790 = vadd.f32 0.0, %v1789
    %v1791 = vpop.f32.mrb[0].mxu0
    %1792 = vdwg.mxu0
    %v1795 = vunpack.c.l.s4 1966171168
    %v1796 = vunpack.c.0.s8 %v1795
    %v1797 = vlaneseq
    %v1798 = vshrl.u32 %v1797, 7
    %v1799 = vsub.s32 %v1796, %v1798
    %v1800 = vrot.slane %v1698, %v1799
    %v1801 = vcombine.high %v1800, %v1800
    %v1803 = vunpack.c.l.s4 1966171168
    %v1804 = vunpack.c.0.s8 %v1803
    %v1805 = vlaneseq
    %v1806 = vshrl.u32 %v1805, 7
    %v1807 = vsub.s32 %v1804, %v1806
    %v1808 = vrot.slane %v1800, %v1807
    %v1810 = vunpack.c.l.s4 1966171168
    %v1811 = vunpack.c.0.s8 %v1810
    %v1812 = vlaneseq
    %v1813 = vshrl.u32 %v1812, 7
    %v1814 = vsub.s32 %v1811, %v1813
    %v1815 = vrot.slane %v1801, %v1814
    %v1816 = vlaneseq
    %v1817 = vshrl.u32 %v1816, 7
    %v1818 = vsub.s32 0, %v1817
    %v1819 = vrot.slane %v1808, %v1818
    %v1820 = vlaneseq
    %v1821 = vshrl.u32 %v1820, 7
    %v1822 = vsub.s32 0, %v1821
    %v1823 = vrot.slane %v1815, %v1822
    %v1826 = vadd.f32 %v1785, %v1819
    %v1827 = vadd.f32 %v1790, %v1823
    %v1828 = vmax.f32 %v1826, 0.0
    %v1829 = vmax.f32 %v1827, 0.0
    %s1830 = scalar_lea.vmem [#allocation8], 384
    %v1831 = vld [vmem:[%s1830] sm:$0xff]
    %v1832 = vld [vmem:[%s1830 + $0x8] sm:$0xff]
    %v1833 = vld [vmem:[%s1830 + $0x10] sm:$0xff]
    %v1834 = vld [vmem:[%s1830 + $0x18] sm:$0xff]
    %v1835 = vld [vmem:[%s1830 + $0x20] sm:$0xff]
    %v1836 = vld [vmem:[%s1830 + $0x28] sm:$0xff]
    %v1837 = vld [vmem:[%s1830 + $0x30] sm:$0xff]
    %v1838 = vld [vmem:[%s1830 + $0x38] sm:$0xff]
    %v1839 = vld [vmem:[%s1830 + $0x40] sm:$0xff]
    %v1840 = vld [vmem:[%s1830 + $0x48] sm:$0xff]
    %v1841 = vld [vmem:[%s1830 + $0x50] sm:$0xff]
    %v1842 = vld [vmem:[%s1830 + $0x58] sm:$0xff]
    %v1843 = vld [vmem:[%s1830 + $0x60] sm:$0xff]
    %v1844 = vld [vmem:[%s1830 + $0x68] sm:$0xff]
    %v1845 = vld [vmem:[%s1830 + $0x70] sm:$0xff]
    %v1846 = vld [vmem:[%s1830 + $0x78] sm:$0xff]
    %1847 = vmatprep.subr.mxu0 0.0
    %1848 = vmatpush1.msra.mxu0 %v1831
    %1849 = vmatprep.subr.mxu0 0.0
    %1850 = vmatpush1.msra.mxu0 %v1832
    %1851 = vmatprep.subr.mxu0 0.0
    %1852 = vmatpush1.msra.mxu0 %v1833
    %1853 = vmatprep.subr.mxu0 0.0
    %1854 = vmatpush1.msra.mxu0 %v1834
    %1855 = vmatprep.subr.mxu0 0.0
    %1856 = vmatpush1.msra.mxu0 %v1835
    %1857 = vmatprep.subr.mxu0 0.0
    %1858 = vmatpush1.msra.mxu0 %v1836
    %1859 = vmatprep.subr.mxu0 0.0
    %1860 = vmatpush1.msra.mxu0 %v1837
    %1861 = vmatprep.subr.mxu0 0.0
    %1862 = vmatpush1.msra.mxu0 %v1838
    %1863 = vmatprep.subr.mxu0 0.0
    %1864 = vmatpush1.msra.mxu0 %v1839
    %1865 = vmatprep.subr.mxu0 0.0
    %1866 = vmatpush1.msra.mxu0 %v1840
    %1867 = vmatprep.subr.mxu0 0.0
    %1868 = vmatpush1.msra.mxu0 %v1841
    %1869 = vmatprep.subr.mxu0 0.0
    %1870 = vmatpush1.msra.mxu0 %v1842
    %1871 = vmatprep.subr.mxu0 0.0
    %1872 = vmatpush1.msra.mxu0 %v1843
    %1873 = vmatprep.subr.mxu0 0.0
    %1874 = vmatpush1.msra.mxu0 %v1844
    %1875 = vmatprep.subr.mxu0 0.0
    %1876 = vmatpush1.msra.mxu0 %v1845
    %1877 = vmatprep.subr.mxu0 0.0
    %1878 = vmatpush1.msra.mxu0 %v1846
    %1879 = vmatprep.subr.mxu0 0.0
    %1880 = vmatpush1.msra.mxu0 0.0
    %1881 = vmatprep.subr.mxu0 0.0
    %1882 = vmatpush1.msra.mxu0 0.0
    %1883 = vmatprep.subr.mxu0 0.0
    %1884 = vmatpush1.msra.mxu0 0.0
    %1885 = vmatprep.subr.mxu0 0.0
    %1886 = vmatpush1.msra.mxu0 0.0
    %1887 = vmatprep.subr.mxu0 0.0
    %1888 = vmatpush1.msra.mxu0 0.0
    %1889 = vmatprep.subr.mxu0 0.0
    %1890 = vmatpush1.msra.mxu0 0.0
    %1891 = vmatprep.subr.mxu0 0.0
    %1892 = vmatpush1.msra.mxu0 0.0
    %1893 = vmatprep.subr.mxu0 0.0
    %1894 = vmatpush1.msra.mxu0 0.0
    %1895 = vmatprep.subr.mxu0 0.0
    %1896 = vmatpush1.msra.mxu0 0.0
    %1897 = vmatprep.subr.mxu0 0.0
    %1898 = vmatpush1.msra.mxu0 0.0
    %1899 = vmatprep.subr.mxu0 0.0
    %1900 = vmatpush1.msra.mxu0 0.0
    %1901 = vmatprep.subr.mxu0 0.0
    %1902 = vmatpush1.msra.mxu0 0.0
    %1903 = vmatprep.subr.mxu0 0.0
    %1904 = vmatpush1.msra.mxu0 0.0
    %1905 = vmatprep.subr.mxu0 0.0
    %1906 = vmatpush1.msra.mxu0 0.0
    %1907 = vmatprep.subr.mxu0 0.0
    %1908 = vmatpush1.msra.mxu0 0.0
    %1909 = vmatprep.subr.mxu0 0.0
    %1910 = vmatpush1.msra.mxu0 0.0
    %1911 = vmatprep.mubr.f32.mxu0 0.0
    %1912 = vmatmul.mubr.f32.gmra.mrb[0].mxu0 %v1828
    %v1913 = vpop.f32.mrb[0].mxu0
    %v1914 = vadd.f32 0.0, %v1913
    %v1915 = vpop.f32.mrb[0].mxu0
    %1916 = vmatprep.mubr.f32.mxu0 0.0
    %1917 = vmatmul.mubr.f32.gmra.mrb[0].mxu0 %v1829
    %v1918 = vpop.f32.mrb[0].mxu0
    %v1919 = vadd.f32 0.0, %v1918
    %v1920 = vpop.f32.mrb[0].mxu0
    %1921 = vdwg.mxu0
    %v1922 = vadd.f32 %v1486, %v1914
    %v1923 = vadd.f32 %v1487, %v1919
    %v1924 = vrot.slane %v1922, 4
    %v1925 = vmax.f32 %v1922, %v1924
    %v1926 = vrot.slane %v1925, 2
    %v1927 = vmax.f32 %v1925, %v1926
    %v1928 = vrot.slane %v1927, 1
    %v1929 = vmax.f32 %v1927, %v1928
    %v1930 = vrot.slane %v1923, 4
    %v1931 = vmax.f32 %v1923, %v1930
    %v1932 = vrot.slane %v1931, 2
    %v1933 = vmax.f32 %v1931, %v1932
    %v1934 = vrot.slane %v1933, 1
    %v1935 = vmax.f32 %v1933, %v1934
    %v1936 = vld [vmem:[%s9] sm:$0x1]
    %v1938 = vlaneseq
    %v1939 = vshrl.u32 %v1938, 7
    %v1940 = vsub.s32 0, %v1939
    %v1941 = vrot.slane %v1936, %v1940
    %v1943 = vadd.f32 %v1929, %v1941
    %v1944 = vadd.f32 %v1935, %v1941
    %v1947 = vrot.slane %v1944, 7
    %v1948 = vsel %vm326, %v1947, %v1943
    %1950 = vst [vmem:[#allocation10] sm:$0x3] %v1948
    // Predicated region
    $region58: #{tpu_custom_call.1} parent=1 // pred_check
      _
    $region59: #{tpu_custom_call.1} parent=1 // pred_check_branch
      %1952 = sbr.rel (0) target = $region61
    $region60: #{tpu_custom_call.1} parent=1 // pred_region
      %s1954 = ssub.s32 32, 32
      %1955 = vsyncadd [#allocation4], %s1954
      %s1957 = sshll.u32 [#allocation10], 4
      %s1958 = int_to_ptr.vmem [resolvable:$true] %s1957
      %1960 = dma.vmem_to_hbm [thread:$0]  %s1958, 32, %s10, [#allocation4]
    $region61: #{tpu_custom_call.1} parent=1 // pred_fallthru
      _
    // Predicated region
    $region62: #{tpu_custom_call.1} parent=1 // pred_check
      _
    $region63: #{tpu_custom_call.1} parent=1 // pred_check_branch
      %1962 = sbr.rel (0) target = $region65
    $region64: #{tpu_custom_call.1} parent=1 // pred_region
      %1963 = dma.done [#allocation4], 32
    $region65: #{tpu_custom_call.1} parent=1 // pred_fallthru
      _
    %1964 = vsyncpa [#allocation3], 1
    %1965 = vsyncpa [#allocation6], 1
    %1966 = vsyncpa [#allocation9], 1
    %1967 = vsyncpa [#allocation4], 1

</llo_original>
